<compile_context>
chip_gen: v5e
topology: v5e:2x2
jax: 0.10.0
libtpu: 0.0.40
codegen_flags: <defaults>
</compile_context>

<pallas_src>
import jax
import jax.numpy as jnp
import jax.scipy.linalg as jsl
from jax import lax
from jax.experimental import pallas as pl
from jax.experimental.pallas import tpu as pltpu

# ---- model hyperparameters (small, consistent with the module's config) ----
B = 2           # batch
L = 16          # configs.seq_len
N = 8           # configs.enc_in (variates == attention tokens)
D = 32          # configs.d_model
H = 4           # configs.n_heads
DH = D // H     # head dim
DFF = 32        # configs.d_ff
E = 2           # configs.e_layers
P = 8           # configs.pred_len
M = 4           # ensemble size (Model.num_models)
MD = M * D      # fused hidden width (= 128, full lane occupancy)
BN = B * N      # fused (batch, variate) token rows (= 16)
G = M * H       # number of (model, head) groups (= 16)
GW = G * BN     # fused score width: all batches/models/heads (= 256)
PPAD = 128      # projection output padded to a full lane width
EPS = 1e-5

assert M * DFF == MD, "fused FFN packing assumes M*d_ff == M*d_model lane width"
assert MD % D == 0 and D % DH == 0

_NVEC = 1 + 10 * E + 2      # rows in the packed bias / LayerNorm-vector array
_NBIG = 3 * E               # packed (128,128) block-diagonal matrices (o,c1,c2)


def ensemble_itrans_kernel(x_ref, wemb_ref, wqkv_ref, big_ref, vecs_ref,
                           pwf_ref, pbf_ref, avg_ref, blk8_ref, vmask_ref,
                           sbias_ref, scal_ref, out_ref):
    f32, bf16 = jnp.float32, jnp.bfloat16

    def seg_layernorm(t, gamma, beta):
        # LayerNorm over each model's D-lane segment of the fused (BN, MD)
        # tile.  One stacked (2*BN, MD) @ (MD, MD) matmul against the
        # block-mean matrix yields E[x] and E[x^2] together (single MXU issue,
        # no mu->var dependency); var = E[x^2] - mu^2 (f32, D=32 -> safe).
        st = jnp.dot(jnp.concatenate([t, t * t], axis=0), avg_ref[...],
                     preferred_element_type=f32)
        mu = st[:BN, :]
        var = st[BN:, :] - mu * mu
        return (t - mu) * lax.rsqrt(var + EPS) * gamma + beta

    # ---- series-wise normalization over time (lane axis of (B*N, L)) ----
    x = x_ref[...]                                          # (BN, L)
    mean = jnp.mean(x, axis=-1, keepdims=True)              # (BN, 1)
    xc = x - mean
    var = jnp.mean(xc * xc, axis=-1, keepdims=True)         # unbiased=False
    stdev = jnp.sqrt(var + 1e-5)
    xn = xc / stdev

    # ---- inverted embedding (tokens = variates), M models fused on lanes ----
    h = jnp.dot(xn.astype(bf16), wemb_ref[...],
                preferred_element_type=f32) + vecs_ref[0]   # (BN, MD)

    scale = 1.0 / (DH ** 0.5)
    for layer in range(E):
        bv = 1 + layer * 10

        # fused Q/K/V: ONE (BN, MD) @ (MD, 3*MD) bf16 matmul, 128-lane slices
        qkv = jnp.dot(h.astype(bf16), wqkv_ref[layer], preferred_element_type=f32)
        q = qkv[:, 0 * MD:1 * MD] + vecs_ref[bv + 0]
        k = qkv[:, 1 * MD:2 * MD] + vecs_ref[bv + 1]
        v = qkv[:, 2 * MD:3 * MD] + vecs_ref[bv + 2]

        # (batch, model, head) block-diagonal K slab via sublane tile + mask
        # (no MXU builder matmul); scores for all B*M*H heads in ONE matmul
        # with the K contraction folded (transposed-RHS dot, no XLU transpose).
        k_bd = jnp.tile(k, (G, 1)) * vmask_ref[...]                      # (GW, MD)
        s = lax.dot_general(q, k_bd,
                            dimension_numbers=(((1,), (1,)), ((), ())),
                            preferred_element_type=f32) * scale          # (BN, GW)
        s = s + sbias_ref[...]                 # -1e9 on cross-batch key lanes
        s = s - jnp.max(s, axis=-1, keepdims=True)   # shift-invariant per group
        ex = jnp.exp(s)
        denom = jnp.dot(ex, blk8_ref[...], preferred_element_type=f32)   # seg sums
        a = ex * pl.reciprocal(denom + 1e-20, approx=True)
        v_bd = jnp.tile(v, (G, 1)) * vmask_ref[...]                      # (GW, MD)
        attn = jnp.dot(a, v_bd, preferred_element_type=f32)              # (BN, MD)
        attn = jnp.dot(attn.astype(bf16), big_ref[3 * layer + 0],
                       preferred_element_type=f32) + vecs_ref[bv + 3]

        # residual + norm1
        h = seg_layernorm(h + attn, vecs_ref[bv + 6], vecs_ref[bv + 7])

        # position-wise FFN (1x1 conv == per-token Linear), fused across models
        y = jnp.dot(h.astype(bf16), big_ref[3 * layer + 1],
                    preferred_element_type=f32) + vecs_ref[bv + 4]
        # TODO(synk): PyTorch F.gelu defaults to exact erf; tanh-approx GELU is
        # used here for robust TPU lowering.
        y = jax.nn.gelu(y)
        y = jnp.dot(y.astype(bf16), big_ref[3 * layer + 2],
                    preferred_element_type=f32) + vecs_ref[bv + 5]

        # residual + norm2
        h = seg_layernorm(h + y, vecs_ref[bv + 8], vecs_ref[bv + 9])

    # encoder final LayerNorm
    h = seg_layernorm(h, vecs_ref[_NVEC - 2], vecs_ref[_NVEC - 1])

    # projection d_model -> pred_len (zero-padded to 128 lanes so the dot and
    # the store are lane-dense); ensemble Linear(M,1) already folded in.
    dec = jnp.dot(h.astype(bf16), pwf_ref[...],
                  preferred_element_type=f32) + pbf_ref[...]             # (BN, 128)

    # de-normalization + ensemble aggregation constants
    out_ref[...] = dec * stdev + mean * scal_ref[0] + scal_ref[1]


def init_params(key):
    """Deterministic synthetic parameters (no checkpoint loading)."""
    ks = iter(jax.random.split(key, 32))

    def nrm(shape, s):
        return jax.random.normal(next(ks), shape, jnp.float32) * s

    p = {}
    p["emb_w"] = nrm((M, L, D), 1.0 / (L ** 0.5))
    p["emb_b"] = nrm((M, 1, D), 0.02)
    for name in ("qw", "kw", "vw", "ow"):
        p[name] = nrm((M, E, D, D), 1.0 / (D ** 0.5))
    for name in ("qb", "kb", "vb", "ob"):
        p[name] = nrm((M, E, 1, D), 0.02)
    p["c1w"] = nrm((M, E, D, DFF), 1.0 / (D ** 0.5))
    p["c1b"] = nrm((M, E, 1, DFF), 0.02)
    p["c2w"] = nrm((M, E, DFF, D), 1.0 / (DFF ** 0.5))
    p["c2b"] = nrm((M, E, 1, D), 0.02)
    p["ln1g"] = jnp.ones((M, E, 1, D), jnp.float32)
    p["ln1b"] = jnp.zeros((M, E, 1, D), jnp.float32)
    p["ln2g"] = jnp.ones((M, E, 1, D), jnp.float32)
    p["ln2b"] = jnp.zeros((M, E, 1, D), jnp.float32)
    p["eng"] = jnp.ones((M, 1, D), jnp.float32)
    p["enb"] = jnp.zeros((M, 1, D), jnp.float32)
    p["pw"] = nrm((M, D, P), 1.0 / (D ** 0.5))
    p["pb"] = nrm((M, P), 0.02)
    p["aggw"] = nrm((M,), 0.5)        # aggregation Linear(4, 1).weight (flat)
    p["aggb"] = nrm((1,), 0.1)        # aggregation bias
    return p


def pack_params(p):
    """One-time host-side prep: fuse the M ensemble members into lane-dense /
    block-diagonal arrays (exact reparameterization), cast weights to bf16,
    and precompute every constant mask the kernel needs."""
    def bdiag(w):  # (M, a, b) -> (M*a, M*b) block-diagonal
        return jsl.block_diag(*[w[m] for m in range(M)])

    wqkv, big = [], []
    vecs = [p["emb_b"].reshape(1, MD)]
    for e in range(E):
        wqkv.append(jnp.concatenate(
            [bdiag(p["qw"][:, e]), bdiag(p["kw"][:, e]), bdiag(p["vw"][:, e])],
            axis=1))                                                   # (MD, 3*MD)
        big += [bdiag(p["ow"][:, e]), bdiag(p["c1w"][:, e]), bdiag(p["c2w"][:, e])]
        vecs += [p["qb"][:, e].reshape(1, MD), p["kb"][:, e].reshape(1, MD),
                 p["vb"][:, e].reshape(1, MD), p["ob"][:, e].reshape(1, MD),
                 p["c1b"][:, e].reshape(1, M * DFF), p["c2b"][:, e].reshape(1, MD),
                 p["ln1g"][:, e].reshape(1, MD), p["ln1b"][:, e].reshape(1, MD),
                 p["ln2g"][:, e].reshape(1, MD), p["ln2b"][:, e].reshape(1, MD)]
    vecs += [p["eng"].reshape(1, MD), p["enb"].reshape(1, MD)]

    # ensemble Linear(M,1) folded into the stacked projection (exact);
    # output lanes zero-padded to 128 so the final dot / store are lane-dense.
    pwf = (p["aggw"][:, None, None] * p["pw"]).reshape(MD, P)
    pwf = jnp.concatenate([pwf, jnp.zeros((MD, PPAD - P), jnp.float32)], axis=1)
    pbf = (p["aggw"][:, None] * p["pb"]).sum(axis=0)
    pbf = jnp.concatenate([pbf, jnp.zeros((PPAD - P,), jnp.float32)])[None, :]

    # ---- host-side constant masks (replace in-kernel iota/select building) ----
    rmd = jnp.arange(MD)
    rgw = jnp.arange(GW)
    rbn = jnp.arange(BN)
    # LayerNorm per-model block mean: 1/D inside each model's (D, D) block
    avg_d = ((rmd[:, None] // D) == (rmd[None, :] // D)).astype(jnp.float32) / D
    # softmax segmented sum over 8-key blocks of the 256-lane score slab
    blk8 = ((rgw[:, None] // N) == (rgw[None, :] // N)).astype(jnp.float32)
    # (batch, token) row -> (model, head) lane-block mask for the K/V slabs
    vmask = ((rgw[:, None] // BN) == (rmd[None, :] // DH)).astype(jnp.float32)
    # additive score bias: 0 on same-batch key lanes, -1e9 on cross-batch lanes
    sbias = jnp.where((rbn[:, None] // N) == ((rgw[None, :] % BN) // N),
                      0.0, -1e9).astype(jnp.float32)

    packed = {
        "wemb": p["emb_w"].transpose(1, 0, 2).reshape(L, MD).astype(jnp.bfloat16),
        "wqkv": jnp.stack(wqkv, axis=0).astype(jnp.bfloat16),    # (E, MD, 3*MD)
        "big": jnp.stack(big, axis=0).astype(jnp.bfloat16),      # (3*E, MD, MD)
        "vecs": jnp.concatenate(vecs, axis=0).reshape(_NVEC, 1, MD),  # f32
        "pwf": pwf.astype(jnp.bfloat16),                         # (MD, 128)
        "pbf": pbf,                                              # (1, 128) f32
        "avg_d": avg_d, "blk8": blk8, "vmask": vmask, "sbias": sbias,
        "scal": jnp.stack([jnp.sum(p["aggw"]),
                           p["aggb"][0]]).astype(jnp.float32),   # [sum(agg_w), agg_b]
    }
    assert packed["big"].shape[0] == _NBIG
    assert packed["vecs"].shape[0] == _NVEC
    return packed


@jax.jit
def ensemble_forward(x, packed):
    # x: [B, T, C] exactly like the PyTorch module's input; lay it out as
    # (B*N, L): rows are (batch, variate) tokens, lanes are time.
    x2d = jnp.transpose(x, (0, 2, 1)).reshape(BN, L)

    vmem = pl.BlockSpec(memory_space=pltpu.MemorySpace.VMEM)
    smem = pl.BlockSpec(memory_space=pltpu.MemorySpace.SMEM)
    out2d = pl.pallas_call(
        ensemble_itrans_kernel,
        out_shape=jax.ShapeDtypeStruct((BN, PPAD), jnp.float32),
        in_specs=[vmem, vmem, vmem, vmem, vmem, vmem, vmem,
                  vmem, vmem, vmem, vmem, smem],
        out_specs=vmem,
    )(x2d, packed["wemb"], packed["wqkv"], packed["big"], packed["vecs"],
      packed["pwf"], packed["pbf"], packed["avg_d"], packed["blk8"],
      packed["vmask"], packed["sbias"], packed["scal"])

    # rows are (b, n), lanes 0..P-1 are the forecast steps  ->  [B, pred_len, N]
    return out2d[:, :P].reshape(B, N, P).transpose(0, 2, 1)


if __name__ == "__main__":
    key = jax.random.PRNGKey(0)
    k_x, k_p = jax.random.split(key)

    # x: [B, T, C] just like the PyTorch module's input.
    x = jax.random.normal(k_x, (B, L, N), jnp.float32)
    # batch_x_mark / dec_inp / batch_y_mark never influence the forecast path
    # (x_mark_enc is forced to None), so they are not kernel inputs.
    params = init_params(k_p)
    packed = pack_params(params)

    out = ensemble_forward(x, packed)
    out = jax.block_until_ready(out)

    assert out.shape == (B, P, N), out.shape
    assert bool(jnp.all(jnp.isfinite(out)))
    print("KERNEL_OK")
</pallas_src>

<mosaic_0001>
module attributes {stable_mosaic.version = 11 : i64} {
  func.func @ensemble_itrans_kernel(%arg0: memref<16x16xf32, #tpu.memory_space<vmem>>, %arg1: memref<16x128xbf16, #tpu.memory_space<vmem>>, %arg2: memref<2x128x384xbf16, #tpu.memory_space<vmem>>, %arg3: memref<6x128x128xbf16, #tpu.memory_space<vmem>>, %arg4: memref<23x1x128xf32, #tpu.memory_space<vmem>>, %arg5: memref<128x128xbf16, #tpu.memory_space<vmem>>, %arg6: memref<1x128xf32, #tpu.memory_space<vmem>>, %arg7: memref<128x128xf32, #tpu.memory_space<vmem>>, %arg8: memref<256x256xf32, #tpu.memory_space<vmem>>, %arg9: memref<256x128xf32, #tpu.memory_space<vmem>>, %arg10: memref<16x256xf32, #tpu.memory_space<vmem>>, %arg11: memref<2xf32, #tpu.memory_space<smem>>, %arg12: memref<16x128xf32, #tpu.memory_space<vmem>>) attributes {dimension_semantics = [], scalar_prefetch = 0 : i64, scratch_operands = 0 : i64, tpu.core_type = #tpu.core_type<tc>} {
    %c0 = arith.constant 0 : index
    %c0_0 = arith.constant 0 : index
    %0 = vector.load %arg0[%c0, %c0_0] : memref<16x16xf32, #tpu.memory_space<vmem>>, vector<16x16xf32>
    %cst = arith.constant dense<0.000000e+00> : vector<16xf32>
    %1 = vector.multi_reduction <add>, %0, %cst [1] : vector<16x16xf32> to vector<16xf32>
    %2 = vector.shape_cast %1 : vector<16xf32> to vector<16x1xf32>
    %cst_1 = arith.constant 1.600000e+01 : f32
    %3 = vector.broadcast %cst_1 : f32 to vector<16x1xf32>
    %4 = arith.divf %2, %3 : vector<16x1xf32>
    %5 = vector.broadcast %4 : vector<16x1xf32> to vector<16x16xf32>
    %6 = arith.subf %0, %5 : vector<16x16xf32>
    %7 = arith.mulf %6, %6 : vector<16x16xf32>
    %cst_2 = arith.constant dense<0.000000e+00> : vector<16xf32>
    %8 = vector.multi_reduction <add>, %7, %cst_2 [1] : vector<16x16xf32> to vector<16xf32>
    %9 = vector.shape_cast %8 : vector<16xf32> to vector<16x1xf32>
    %cst_3 = arith.constant 1.600000e+01 : f32
    %10 = vector.broadcast %cst_3 : f32 to vector<16x1xf32>
    %11 = arith.divf %9, %10 : vector<16x1xf32>
    %cst_4 = arith.constant 9.99999974E-6 : f32
    %12 = vector.broadcast %cst_4 : f32 to vector<16x1xf32>
    %13 = arith.addf %11, %12 : vector<16x1xf32>
    %14 = math.sqrt %13 : vector<16x1xf32>
    %15 = vector.broadcast %14 : vector<16x1xf32> to vector<16x16xf32>
    %16 = arith.divf %6, %15 : vector<16x16xf32>
    %17 = arith.truncf %16 : vector<16x16xf32> to vector<16x16xbf16>
    %c0_5 = arith.constant 0 : index
    %c0_6 = arith.constant 0 : index
    %18 = vector.load %arg1[%c0_5, %c0_6] : memref<16x128xbf16, #tpu.memory_space<vmem>>, vector<16x128xbf16>
    %cst_7 = arith.constant dense<0.000000e+00> : vector<16x128xf32>
    %19 = tpu.matmul %17, %18, %cst_7 {dimension_numbers = #tpu.dot_dimension_numbers<[1], [0], [0], [1], [0, 0, 1, 1], [], []>} : vector<16x16xbf16>, vector<16x128xbf16>, vector<16x128xf32> -> vector<16x128xf32>
    %c0_8 = arith.constant 0 : index
    %c0_9 = arith.constant 0 : index
    %c0_10 = arith.constant 0 : index
    %20 = vector.load %arg4[%c0_8, %c0_9, %c0_10] : memref<23x1x128xf32, #tpu.memory_space<vmem>>, vector<1x1x128xf32>
    %21 = vector.shape_cast %20 : vector<1x1x128xf32> to vector<1x128xf32>
    %22 = vector.broadcast %21 : vector<1x128xf32> to vector<16x128xf32>
    %23 = arith.addf %19, %22 : vector<16x128xf32>
    %24 = arith.truncf %23 : vector<16x128xf32> to vector<16x128xbf16>
    %c0_11 = arith.constant 0 : index
    %c0_12 = arith.constant 0 : index
    %c0_13 = arith.constant 0 : index
    %25 = vector.load %arg2[%c0_11, %c0_12, %c0_13] : memref<2x128x384xbf16, #tpu.memory_space<vmem>>, vector<1x128x384xbf16>
    %26 = vector.shape_cast %25 : vector<1x128x384xbf16> to vector<128x384xbf16>
    %cst_14 = arith.constant dense<0.000000e+00> : vector<16x384xf32>
    %27 = tpu.matmul %24, %26, %cst_14 {dimension_numbers = #tpu.dot_dimension_numbers<[1], [0], [0], [1], [0, 0, 1, 1], [], []>} : vector<16x128xbf16>, vector<128x384xbf16>, vector<16x384xf32> -> vector<16x384xf32>
    %28 = vector.extract_strided_slice %27 {offsets = [0, 0], sizes = [16, 128], strides = [1, 1]} : vector<16x384xf32> to vector<16x128xf32>
    %c1 = arith.constant 1 : index
    %c0_15 = arith.constant 0 : index
    %c0_16 = arith.constant 0 : index
    %29 = vector.load %arg4[%c1, %c0_15, %c0_16] : memref<23x1x128xf32, #tpu.memory_space<vmem>>, vector<1x1x128xf32>
    %30 = vector.shape_cast %29 : vector<1x1x128xf32> to vector<1x128xf32>
    %31 = vector.broadcast %30 : vector<1x128xf32> to vector<16x128xf32>
    %32 = arith.addf %28, %31 : vector<16x128xf32>
    %33 = vector.extract_strided_slice %27 {offsets = [0, 128], sizes = [16, 128], strides = [1, 1]} : vector<16x384xf32> to vector<16x128xf32>
    %c2 = arith.constant 2 : index
    %c0_17 = arith.constant 0 : index
    %c0_18 = arith.constant 0 : index
    %34 = vector.load %arg4[%c2, %c0_17, %c0_18] : memref<23x1x128xf32, #tpu.memory_space<vmem>>, vector<1x1x128xf32>
    %35 = vector.shape_cast %34 : vector<1x1x128xf32> to vector<1x128xf32>
    %36 = vector.broadcast %35 : vector<1x128xf32> to vector<16x128xf32>
    %37 = arith.addf %33, %36 : vector<16x128xf32>
    %38 = vector.extract_strided_slice %27 {offsets = [0, 256], sizes = [16, 128], strides = [1, 1]} : vector<16x384xf32> to vector<16x128xf32>
    %c3 = arith.constant 3 : index
    %c0_19 = arith.constant 0 : index
    %c0_20 = arith.constant 0 : index
    %39 = vector.load %arg4[%c3, %c0_19, %c0_20] : memref<23x1x128xf32, #tpu.memory_space<vmem>>, vector<1x1x128xf32>
    %40 = vector.shape_cast %39 : vector<1x1x128xf32> to vector<1x128xf32>
    %41 = vector.broadcast %40 : vector<1x128xf32> to vector<16x128xf32>
    %42 = arith.addf %38, %41 : vector<16x128xf32>
    %43 = tpu.concatenate %37, %37, %37, %37, %37, %37, %37, %37, %37, %37, %37, %37, %37, %37, %37, %37 in 0 : vector<16x128xf32>, vector<16x128xf32>, vector<16x128xf32>, vector<16x128xf32>, vector<16x128xf32>, vector<16x128xf32>, vector<16x128xf32>, vector<16x128xf32>, vector<16x128xf32>, vector<16x128xf32>, vector<16x128xf32>, vector<16x128xf32>, vector<16x128xf32>, vector<16x128xf32>, vector<16x128xf32>, vector<16x128xf32> -> vector<256x128xf32>
    %c0_21 = arith.constant 0 : index
    %c0_22 = arith.constant 0 : index
    %44 = vector.load %arg9[%c0_21, %c0_22] : memref<256x128xf32, #tpu.memory_space<vmem>>, vector<256x128xf32>
    %45 = arith.mulf %43, %44 : vector<256x128xf32>
    %cst_23 = arith.constant dense<0.000000e+00> : vector<16x256xf32>
    %46 = tpu.matmul %32, %45, %cst_23 {dimension_numbers = #tpu.dot_dimension_numbers<[1], [1], [0], [0], [0, 0, 1, 0], [], []>} : vector<16x128xf32>, vector<256x128xf32>, vector<16x256xf32> -> vector<16x256xf32>
    %cst_24 = arith.constant 0.353553385 : f32
    %47 = vector.broadcast %cst_24 : f32 to vector<16x256xf32>
    %48 = arith.mulf %46, %47 : vector<16x256xf32>
    %c0_25 = arith.constant 0 : index
    %c0_26 = arith.constant 0 : index
    %49 = vector.load %arg10[%c0_25, %c0_26] : memref<16x256xf32, #tpu.memory_space<vmem>>, vector<16x256xf32>
    %50 = arith.addf %48, %49 : vector<16x256xf32>
    %cst_27 = arith.constant dense<0xFF800000> : vector<16xf32>
    %51 = vector.multi_reduction <maximumf>, %50, %cst_27 [1] : vector<16x256xf32> to vector<16xf32>
    %52 = vector.shape_cast %51 : vector<16xf32> to vector<16x1xf32>
    %53 = vector.broadcast %52 : vector<16x1xf32> to vector<16x256xf32>
    %54 = arith.subf %50, %53 : vector<16x256xf32>
    %55 = math.exp %54 : vector<16x256xf32>
    %c0_28 = arith.constant 0 : index
    %c0_29 = arith.constant 0 : index
    %56 = vector.load %arg8[%c0_28, %c0_29] : memref<256x256xf32, #tpu.memory_space<vmem>>, vector<256x256xf32>
    %cst_30 = arith.constant dense<0.000000e+00> : vector<16x256xf32>
    %57 = tpu.matmul %55, %56, %cst_30 {dimension_numbers = #tpu.dot_dimension_numbers<[1], [0], [0], [1], [0, 0, 1, 1], [], []>} : vector<16x256xf32>, vector<256x256xf32>, vector<16x256xf32> -> vector<16x256xf32>
    %cst_31 = arith.constant 9.99999968E-21 : f32
    %58 = vector.broadcast %cst_31 : f32 to vector<16x256xf32>
    %59 = arith.addf %57, %58 : vector<16x256xf32>
    %60 = tpu.reciprocal %59 {approx = true} : vector<16x256xf32> -> vector<16x256xf32>
    %61 = arith.mulf %55, %60 : vector<16x256xf32>
    %62 = tpu.concatenate %42, %42, %42, %42, %42, %42, %42, %42, %42, %42, %42, %42, %42, %42, %42, %42 in 0 : vector<16x128xf32>, vector<16x128xf32>, vector<16x128xf32>, vector<16x128xf32>, vector<16x128xf32>, vector<16x128xf32>, vector<16x128xf32>, vector<16x128xf32>, vector<16x128xf32>, vector<16x128xf32>, vector<16x128xf32>, vector<16x128xf32>, vector<16x128xf32>, vector<16x128xf32>, vector<16x128xf32>, vector<16x128xf32> -> vector<256x128xf32>
    %c0_32 = arith.constant 0 : index
    %c0_33 = arith.constant 0 : index
    %63 = vector.load %arg9[%c0_32, %c0_33] : memref<256x128xf32, #tpu.memory_space<vmem>>, vector<256x128xf32>
    %64 = arith.mulf %62, %63 : vector<256x128xf32>
    %cst_34 = arith.constant dense<0.000000e+00> : vector<16x128xf32>
    %65 = tpu.matmul %61, %64, %cst_34 {dimension_numbers = #tpu.dot_dimension_numbers<[1], [0], [0], [1], [0, 0, 1, 1], [], []>} : vector<16x256xf32>, vector<256x128xf32>, vector<16x128xf32> -> vector<16x128xf32>
    %66 = arith.truncf %65 : vector<16x128xf32> to vector<16x128xbf16>
    %c0_35 = arith.constant 0 : index
    %c0_36 = arith.constant 0 : index
    %c0_37 = arith.constant 0 : index
    %67 = vector.load %arg3[%c0_35, %c0_36, %c0_37] : memref<6x128x128xbf16, #tpu.memory_space<vmem>>, vector<1x128x128xbf16>
    %68 = vector.shape_cast %67 : vector<1x128x128xbf16> to vector<128x128xbf16>
    %cst_38 = arith.constant dense<0.000000e+00> : vector<16x128xf32>
    %69 = tpu.matmul %66, %68, %cst_38 {dimension_numbers = #tpu.dot_dimension_numbers<[1], [0], [0], [1], [0, 0, 1, 1], [], []>} : vector<16x128xbf16>, vector<128x128xbf16>, vector<16x128xf32> -> vector<16x128xf32>
    %c4 = arith.constant 4 : index
    %c0_39 = arith.constant 0 : index
    %c0_40 = arith.constant 0 : index
    %70 = vector.load %arg4[%c4, %c0_39, %c0_40] : memref<23x1x128xf32, #tpu.memory_space<vmem>>, vector<1x1x128xf32>
    %71 = vector.shape_cast %70 : vector<1x1x128xf32> to vector<1x128xf32>
    %72 = vector.broadcast %71 : vector<1x128xf32> to vector<16x128xf32>
    %73 = arith.addf %69, %72 : vector<16x128xf32>
    %74 = arith.addf %23, %73 : vector<16x128xf32>
    %c7 = arith.constant 7 : index
    %c0_41 = arith.constant 0 : index
    %c0_42 = arith.constant 0 : index
    %75 = vector.load %arg4[%c7, %c0_41, %c0_42] : memref<23x1x128xf32, #tpu.memory_space<vmem>>, vector<1x1x128xf32>
    %76 = vector.shape_cast %75 : vector<1x1x128xf32> to vector<1x128xf32>
    %c8 = arith.constant 8 : index
    %c0_43 = arith.constant 0 : index
    %c0_44 = arith.constant 0 : index
    %77 = vector.load %arg4[%c8, %c0_43, %c0_44] : memref<23x1x128xf32, #tpu.memory_space<vmem>>, vector<1x1x128xf32>
    %78 = vector.shape_cast %77 : vector<1x1x128xf32> to vector<1x128xf32>
    %79 = arith.mulf %74, %74 : vector<16x128xf32>
    %80 = tpu.concatenate %74, %79 in 0 : vector<16x128xf32>, vector<16x128xf32> -> vector<32x128xf32>
    %c0_45 = arith.constant 0 : index
    %c0_46 = arith.constant 0 : index
    %81 = vector.load %arg7[%c0_45, %c0_46] : memref<128x128xf32, #tpu.memory_space<vmem>>, vector<128x128xf32>
    %cst_47 = arith.constant dense<0.000000e+00> : vector<32x128xf32>
    %82 = tpu.matmul %80, %81, %cst_47 {dimension_numbers = #tpu.dot_dimension_numbers<[1], [0], [0], [1], [0, 0, 1, 1], [], []>} : vector<32x128xf32>, vector<128x128xf32>, vector<32x128xf32> -> vector<32x128xf32>
    %83 = vector.extract_strided_slice %82 {offsets = [0, 0], sizes = [16, 128], strides = [1, 1]} : vector<32x128xf32> to vector<16x128xf32>
    %84 = vector.extract_strided_slice %82 {offsets = [16, 0], sizes = [16, 128], strides = [1, 1]} : vector<32x128xf32> to vector<16x128xf32>
    %85 = arith.mulf %83, %83 : vector<16x128xf32>
    %86 = arith.subf %84, %85 : vector<16x128xf32>
    %87 = arith.subf %74, %83 : vector<16x128xf32>
    %cst_48 = arith.constant 9.99999974E-6 : f32
    %88 = vector.broadcast %cst_48 : f32 to vector<16x128xf32>
    %89 = arith.addf %86, %88 : vector<16x128xf32>
    %90 = math.rsqrt %89 : vector<16x128xf32>
    %91 = arith.mulf %87, %90 : vector<16x128xf32>
    %92 = vector.broadcast %76 : vector<1x128xf32> to vector<16x128xf32>
    %93 = arith.mulf %91, %92 : vector<16x128xf32>
    %94 = vector.broadcast %78 : vector<1x128xf32> to vector<16x128xf32>
    %95 = arith.addf %93, %94 : vector<16x128xf32>
    %96 = arith.truncf %95 : vector<16x128xf32> to vector<16x128xbf16>
    %c1_49 = arith.constant 1 : index
    %c0_50 = arith.constant 0 : index
    %c0_51 = arith.constant 0 : index
    %97 = vector.load %arg3[%c1_49, %c0_50, %c0_51] : memref<6x128x128xbf16, #tpu.memory_space<vmem>>, vector<1x128x128xbf16>
    %98 = vector.shape_cast %97 : vector<1x128x128xbf16> to vector<128x128xbf16>
    %cst_52 = arith.constant dense<0.000000e+00> : vector<16x128xf32>
    %99 = tpu.matmul %96, %98, %cst_52 {dimension_numbers = #tpu.dot_dimension_numbers<[1], [0], [0], [1], [0, 0, 1, 1], [], []>} : vector<16x128xbf16>, vector<128x128xbf16>, vector<16x128xf32> -> vector<16x128xf32>
    %c5 = arith.constant 5 : index
    %c0_53 = arith.constant 0 : index
    %c0_54 = arith.constant 0 : index
    %100 = vector.load %arg4[%c5, %c0_53, %c0_54] : memref<23x1x128xf32, #tpu.memory_space<vmem>>, vector<1x1x128xf32>
    %101 = vector.shape_cast %100 : vector<1x1x128xf32> to vector<1x128xf32>
    %102 = vector.broadcast %101 : vector<1x128xf32> to vector<16x128xf32>
    %103 = arith.addf %99, %102 : vector<16x128xf32>
    %104 = arith.mulf %103, %103 : vector<16x128xf32>
    %105 = arith.mulf %103, %104 : vector<16x128xf32>
    %cst_55 = arith.constant 4.471500e-02 : f32
    %106 = vector.broadcast %cst_55 : f32 to vector<16x128xf32>
    %107 = arith.mulf %106, %105 : vector<16x128xf32>
    %108 = arith.addf %103, %107 : vector<16x128xf32>
    %cst_56 = arith.constant 0.797884583 : f32
    %109 = vector.broadcast %cst_56 : f32 to vector<16x128xf32>
    %110 = arith.mulf %109, %108 : vector<16x128xf32>
    %111 = math.tanh %110 : vector<16x128xf32>
    %cst_57 = arith.constant 1.000000e+00 : f32
    %112 = vector.broadcast %cst_57 : f32 to vector<16x128xf32>
    %113 = arith.addf %112, %111 : vector<16x128xf32>
    %cst_58 = arith.constant 5.000000e-01 : f32
    %114 = vector.broadcast %cst_58 : f32 to vector<16x128xf32>
    %115 = arith.mulf %114, %113 : vector<16x128xf32>
    %116 = arith.mulf %103, %115 : vector<16x128xf32>
    %117 = arith.truncf %116 : vector<16x128xf32> to vector<16x128xbf16>
    %c2_59 = arith.constant 2 : index
    %c0_60 = arith.constant 0 : index
    %c0_61 = arith.constant 0 : index
    %118 = vector.load %arg3[%c2_59, %c0_60, %c0_61] : memref<6x128x128xbf16, #tpu.memory_space<vmem>>, vector<1x128x128xbf16>
    %119 = vector.shape_cast %118 : vector<1x128x128xbf16> to vector<128x128xbf16>
    %cst_62 = arith.constant dense<0.000000e+00> : vector<16x128xf32>
    %120 = tpu.matmul %117, %119, %cst_62 {dimension_numbers = #tpu.dot_dimension_numbers<[1], [0], [0], [1], [0, 0, 1, 1], [], []>} : vector<16x128xbf16>, vector<128x128xbf16>, vector<16x128xf32> -> vector<16x128xf32>
    %c6 = arith.constant 6 : index
    %c0_63 = arith.constant 0 : index
    %c0_64 = arith.constant 0 : index
    %121 = vector.load %arg4[%c6, %c0_63, %c0_64] : memref<23x1x128xf32, #tpu.memory_space<vmem>>, vector<1x1x128xf32>
    %122 = vector.shape_cast %121 : vector<1x1x128xf32> to vector<1x128xf32>
    %123 = vector.broadcast %122 : vector<1x128xf32> to vector<16x128xf32>
    %124 = arith.addf %120, %123 : vector<16x128xf32>
    %125 = arith.addf %95, %124 : vector<16x128xf32>
    %c9 = arith.constant 9 : index
    %c0_65 = arith.constant 0 : index
    %c0_66 = arith.constant 0 : index
    %126 = vector.load %arg4[%c9, %c0_65, %c0_66] : memref<23x1x128xf32, #tpu.memory_space<vmem>>, vector<1x1x128xf32>
    %127 = vector.shape_cast %126 : vector<1x1x128xf32> to vector<1x128xf32>
    %c10 = arith.constant 10 : index
    %c0_67 = arith.constant 0 : index
    %c0_68 = arith.constant 0 : index
    %128 = vector.load %arg4[%c10, %c0_67, %c0_68] : memref<23x1x128xf32, #tpu.memory_space<vmem>>, vector<1x1x128xf32>
    %129 = vector.shape_cast %128 : vector<1x1x128xf32> to vector<1x128xf32>
    %130 = arith.mulf %125, %125 : vector<16x128xf32>
    %131 = tpu.concatenate %125, %130 in 0 : vector<16x128xf32>, vector<16x128xf32> -> vector<32x128xf32>
    %c0_69 = arith.constant 0 : index
    %c0_70 = arith.constant 0 : index
    %132 = vector.load %arg7[%c0_69, %c0_70] : memref<128x128xf32, #tpu.memory_space<vmem>>, vector<128x128xf32>
    %cst_71 = arith.constant dense<0.000000e+00> : vector<32x128xf32>
    %133 = tpu.matmul %131, %132, %cst_71 {dimension_numbers = #tpu.dot_dimension_numbers<[1], [0], [0], [1], [0, 0, 1, 1], [], []>} : vector<32x128xf32>, vector<128x128xf32>, vector<32x128xf32> -> vector<32x128xf32>
    %134 = vector.extract_strided_slice %133 {offsets = [0, 0], sizes = [16, 128], strides = [1, 1]} : vector<32x128xf32> to vector<16x128xf32>
    %135 = vector.extract_strided_slice %133 {offsets = [16, 0], sizes = [16, 128], strides = [1, 1]} : vector<32x128xf32> to vector<16x128xf32>
    %136 = arith.mulf %134, %134 : vector<16x128xf32>
    %137 = arith.subf %135, %136 : vector<16x128xf32>
    %138 = arith.subf %125, %134 : vector<16x128xf32>
    %cst_72 = arith.constant 9.99999974E-6 : f32
    %139 = vector.broadcast %cst_72 : f32 to vector<16x128xf32>
    %140 = arith.addf %137, %139 : vector<16x128xf32>
    %141 = math.rsqrt %140 : vector<16x128xf32>
    %142 = arith.mulf %138, %141 : vector<16x128xf32>
    %143 = vector.broadcast %127 : vector<1x128xf32> to vector<16x128xf32>
    %144 = arith.mulf %142, %143 : vector<16x128xf32>
    %145 = vector.broadcast %129 : vector<1x128xf32> to vector<16x128xf32>
    %146 = arith.addf %144, %145 : vector<16x128xf32>
    %147 = arith.truncf %146 : vector<16x128xf32> to vector<16x128xbf16>
    %c1_73 = arith.constant 1 : index
    %c0_74 = arith.constant 0 : index
    %c0_75 = arith.constant 0 : index
    %148 = vector.load %arg2[%c1_73, %c0_74, %c0_75] : memref<2x128x384xbf16, #tpu.memory_space<vmem>>, vector<1x128x384xbf16>
    %149 = vector.shape_cast %148 : vector<1x128x384xbf16> to vector<128x384xbf16>
    %cst_76 = arith.constant dense<0.000000e+00> : vector<16x384xf32>
    %150 = tpu.matmul %147, %149, %cst_76 {dimension_numbers = #tpu.dot_dimension_numbers<[1], [0], [0], [1], [0, 0, 1, 1], [], []>} : vector<16x128xbf16>, vector<128x384xbf16>, vector<16x384xf32> -> vector<16x384xf32>
    %151 = vector.extract_strided_slice %150 {offsets = [0, 0], sizes = [16, 128], strides = [1, 1]} : vector<16x384xf32> to vector<16x128xf32>
    %c11 = arith.constant 11 : index
    %c0_77 = arith.constant 0 : index
    %c0_78 = arith.constant 0 : index
    %152 = vector.load %arg4[%c11, %c0_77, %c0_78] : memref<23x1x128xf32, #tpu.memory_space<vmem>>, vector<1x1x128xf32>
    %153 = vector.shape_cast %152 : vector<1x1x128xf32> to vector<1x128xf32>
    %154 = vector.broadcast %153 : vector<1x128xf32> to vector<16x128xf32>
    %155 = arith.addf %151, %154 : vector<16x128xf32>
    %156 = vector.extract_strided_slice %150 {offsets = [0, 128], sizes = [16, 128], strides = [1, 1]} : vector<16x384xf32> to vector<16x128xf32>
    %c12 = arith.constant 12 : index
    %c0_79 = arith.constant 0 : index
    %c0_80 = arith.constant 0 : index
    %157 = vector.load %arg4[%c12, %c0_79, %c0_80] : memref<23x1x128xf32, #tpu.memory_space<vmem>>, vector<1x1x128xf32>
    %158 = vector.shape_cast %157 : vector<1x1x128xf32> to vector<1x128xf32>
    %159 = vector.broadcast %158 : vector<1x128xf32> to vector<16x128xf32>
    %160 = arith.addf %156, %159 : vector<16x128xf32>
    %161 = vector.extract_strided_slice %150 {offsets = [0, 256], sizes = [16, 128], strides = [1, 1]} : vector<16x384xf32> to vector<16x128xf32>
    %c13 = arith.constant 13 : index
    %c0_81 = arith.constant 0 : index
    %c0_82 = arith.constant 0 : index
    %162 = vector.load %arg4[%c13, %c0_81, %c0_82] : memref<23x1x128xf32, #tpu.memory_space<vmem>>, vector<1x1x128xf32>
    %163 = vector.shape_cast %162 : vector<1x1x128xf32> to vector<1x128xf32>
    %164 = vector.broadcast %163 : vector<1x128xf32> to vector<16x128xf32>
    %165 = arith.addf %161, %164 : vector<16x128xf32>
    %166 = tpu.concatenate %160, %160, %160, %160, %160, %160, %160, %160, %160, %160, %160, %160, %160, %160, %160, %160 in 0 : vector<16x128xf32>, vector<16x128xf32>, vector<16x128xf32>, vector<16x128xf32>, vector<16x128xf32>, vector<16x128xf32>, vector<16x128xf32>, vector<16x128xf32>, vector<16x128xf32>, vector<16x128xf32>, vector<16x128xf32>, vector<16x128xf32>, vector<16x128xf32>, vector<16x128xf32>, vector<16x128xf32>, vector<16x128xf32> -> vector<256x128xf32>
    %c0_83 = arith.constant 0 : index
    %c0_84 = arith.constant 0 : index
    %167 = vector.load %arg9[%c0_83, %c0_84] : memref<256x128xf32, #tpu.memory_space<vmem>>, vector<256x128xf32>
    %168 = arith.mulf %166, %167 : vector<256x128xf32>
    %cst_85 = arith.constant dense<0.000000e+00> : vector<16x256xf32>
    %169 = tpu.matmul %155, %168, %cst_85 {dimension_numbers = #tpu.dot_dimension_numbers<[1], [1], [0], [0], [0, 0, 1, 0], [], []>} : vector<16x128xf32>, vector<256x128xf32>, vector<16x256xf32> -> vector<16x256xf32>
    %cst_86 = arith.constant 0.353553385 : f32
    %170 = vector.broadcast %cst_86 : f32 to vector<16x256xf32>
    %171 = arith.mulf %169, %170 : vector<16x256xf32>
    %c0_87 = arith.constant 0 : index
    %c0_88 = arith.constant 0 : index
    %172 = vector.load %arg10[%c0_87, %c0_88] : memref<16x256xf32, #tpu.memory_space<vmem>>, vector<16x256xf32>
    %173 = arith.addf %171, %172 : vector<16x256xf32>
    %cst_89 = arith.constant dense<0xFF800000> : vector<16xf32>
    %174 = vector.multi_reduction <maximumf>, %173, %cst_89 [1] : vector<16x256xf32> to vector<16xf32>
    %175 = vector.shape_cast %174 : vector<16xf32> to vector<16x1xf32>
    %176 = vector.broadcast %175 : vector<16x1xf32> to vector<16x256xf32>
    %177 = arith.subf %173, %176 : vector<16x256xf32>
    %178 = math.exp %177 : vector<16x256xf32>
    %c0_90 = arith.constant 0 : index
    %c0_91 = arith.constant 0 : index
    %179 = vector.load %arg8[%c0_90, %c0_91] : memref<256x256xf32, #tpu.memory_space<vmem>>, vector<256x256xf32>
    %cst_92 = arith.constant dense<0.000000e+00> : vector<16x256xf32>
    %180 = tpu.matmul %178, %179, %cst_92 {dimension_numbers = #tpu.dot_dimension_numbers<[1], [0], [0], [1], [0, 0, 1, 1], [], []>} : vector<16x256xf32>, vector<256x256xf32>, vector<16x256xf32> -> vector<16x256xf32>
    %cst_93 = arith.constant 9.99999968E-21 : f32
    %181 = vector.broadcast %cst_93 : f32 to vector<16x256xf32>
    %182 = arith.addf %180, %181 : vector<16x256xf32>
    %183 = tpu.reciprocal %182 {approx = true} : vector<16x256xf32> -> vector<16x256xf32>
    %184 = arith.mulf %178, %183 : vector<16x256xf32>
    %185 = tpu.concatenate %165, %165, %165, %165, %165, %165, %165, %165, %165, %165, %165, %165, %165, %165, %165, %165 in 0 : vector<16x128xf32>, vector<16x128xf32>, vector<16x128xf32>, vector<16x128xf32>, vector<16x128xf32>, vector<16x128xf32>, vector<16x128xf32>, vector<16x128xf32>, vector<16x128xf32>, vector<16x128xf32>, vector<16x128xf32>, vector<16x128xf32>, vector<16x128xf32>, vector<16x128xf32>, vector<16x128xf32>, vector<16x128xf32> -> vector<256x128xf32>
    %c0_94 = arith.constant 0 : index
    %c0_95 = arith.constant 0 : index
    %186 = vector.load %arg9[%c0_94, %c0_95] : memref<256x128xf32, #tpu.memory_space<vmem>>, vector<256x128xf32>
    %187 = arith.mulf %185, %186 : vector<256x128xf32>
    %cst_96 = arith.constant dense<0.000000e+00> : vector<16x128xf32>
    %188 = tpu.matmul %184, %187, %cst_96 {dimension_numbers = #tpu.dot_dimension_numbers<[1], [0], [0], [1], [0, 0, 1, 1], [], []>} : vector<16x256xf32>, vector<256x128xf32>, vector<16x128xf32> -> vector<16x128xf32>
    %189 = arith.truncf %188 : vector<16x128xf32> to vector<16x128xbf16>
    %c3_97 = arith.constant 3 : index
    %c0_98 = arith.constant 0 : index
    %c0_99 = arith.constant 0 : index
    %190 = vector.load %arg3[%c3_97, %c0_98, %c0_99] : memref<6x128x128xbf16, #tpu.memory_space<vmem>>, vector<1x128x128xbf16>
    %191 = vector.shape_cast %190 : vector<1x128x128xbf16> to vector<128x128xbf16>
    %cst_100 = arith.constant dense<0.000000e+00> : vector<16x128xf32>
    %192 = tpu.matmul %189, %191, %cst_100 {dimension_numbers = #tpu.dot_dimension_numbers<[1], [0], [0], [1], [0, 0, 1, 1], [], []>} : vector<16x128xbf16>, vector<128x128xbf16>, vector<16x128xf32> -> vector<16x128xf32>
    %c14 = arith.constant 14 : index
    %c0_101 = arith.constant 0 : index
    %c0_102 = arith.constant 0 : index
    %193 = vector.load %arg4[%c14, %c0_101, %c0_102] : memref<23x1x128xf32, #tpu.memory_space<vmem>>, vector<1x1x128xf32>
    %194 = vector.shape_cast %193 : vector<1x1x128xf32> to vector<1x128xf32>
    %195 = vector.broadcast %194 : vector<1x128xf32> to vector<16x128xf32>
    %196 = arith.addf %192, %195 : vector<16x128xf32>
    %197 = arith.addf %146, %196 : vector<16x128xf32>
    %c17 = arith.constant 17 : index
    %c0_103 = arith.constant 0 : index
    %c0_104 = arith.constant 0 : index
    %198 = vector.load %arg4[%c17, %c0_103, %c0_104] : memref<23x1x128xf32, #tpu.memory_space<vmem>>, vector<1x1x128xf32>
    %199 = vector.shape_cast %198 : vector<1x1x128xf32> to vector<1x128xf32>
    %c18 = arith.constant 18 : index
    %c0_105 = arith.constant 0 : index
    %c0_106 = arith.constant 0 : index
    %200 = vector.load %arg4[%c18, %c0_105, %c0_106] : memref<23x1x128xf32, #tpu.memory_space<vmem>>, vector<1x1x128xf32>
    %201 = vector.shape_cast %200 : vector<1x1x128xf32> to vector<1x128xf32>
    %202 = arith.mulf %197, %197 : vector<16x128xf32>
    %203 = tpu.concatenate %197, %202 in 0 : vector<16x128xf32>, vector<16x128xf32> -> vector<32x128xf32>
    %c0_107 = arith.constant 0 : index
    %c0_108 = arith.constant 0 : index
    %204 = vector.load %arg7[%c0_107, %c0_108] : memref<128x128xf32, #tpu.memory_space<vmem>>, vector<128x128xf32>
    %cst_109 = arith.constant dense<0.000000e+00> : vector<32x128xf32>
    %205 = tpu.matmul %203, %204, %cst_109 {dimension_numbers = #tpu.dot_dimension_numbers<[1], [0], [0], [1], [0, 0, 1, 1], [], []>} : vector<32x128xf32>, vector<128x128xf32>, vector<32x128xf32> -> vector<32x128xf32>
    %206 = vector.extract_strided_slice %205 {offsets = [0, 0], sizes = [16, 128], strides = [1, 1]} : vector<32x128xf32> to vector<16x128xf32>
    %207 = vector.extract_strided_slice %205 {offsets = [16, 0], sizes = [16, 128], strides = [1, 1]} : vector<32x128xf32> to vector<16x128xf32>
    %208 = arith.mulf %206, %206 : vector<16x128xf32>
    %209 = arith.subf %207, %208 : vector<16x128xf32>
    %210 = arith.subf %197, %206 : vector<16x128xf32>
    %cst_110 = arith.constant 9.99999974E-6 : f32
    %211 = vector.broadcast %cst_110 : f32 to vector<16x128xf32>
    %212 = arith.addf %209, %211 : vector<16x128xf32>
    %213 = math.rsqrt %212 : vector<16x128xf32>
    %214 = arith.mulf %210, %213 : vector<16x128xf32>
    %215 = vector.broadcast %199 : vector<1x128xf32> to vector<16x128xf32>
    %216 = arith.mulf %214, %215 : vector<16x128xf32>
    %217 = vector.broadcast %201 : vector<1x128xf32> to vector<16x128xf32>
    %218 = arith.addf %216, %217 : vector<16x128xf32>
    %219 = arith.truncf %218 : vector<16x128xf32> to vector<16x128xbf16>
    %c4_111 = arith.constant 4 : index
    %c0_112 = arith.constant 0 : index
    %c0_113 = arith.constant 0 : index
    %220 = vector.load %arg3[%c4_111, %c0_112, %c0_113] : memref<6x128x128xbf16, #tpu.memory_space<vmem>>, vector<1x128x128xbf16>
    %221 = vector.shape_cast %220 : vector<1x128x128xbf16> to vector<128x128xbf16>
    %cst_114 = arith.constant dense<0.000000e+00> : vector<16x128xf32>
    %222 = tpu.matmul %219, %221, %cst_114 {dimension_numbers = #tpu.dot_dimension_numbers<[1], [0], [0], [1], [0, 0, 1, 1], [], []>} : vector<16x128xbf16>, vector<128x128xbf16>, vector<16x128xf32> -> vector<16x128xf32>
    %c15 = arith.constant 15 : index
    %c0_115 = arith.constant 0 : index
    %c0_116 = arith.constant 0 : index
    %223 = vector.load %arg4[%c15, %c0_115, %c0_116] : memref<23x1x128xf32, #tpu.memory_space<vmem>>, vector<1x1x128xf32>
    %224 = vector.shape_cast %223 : vector<1x1x128xf32> to vector<1x128xf32>
    %225 = vector.broadcast %224 : vector<1x128xf32> to vector<16x128xf32>
    %226 = arith.addf %222, %225 : vector<16x128xf32>
    %227 = arith.mulf %226, %226 : vector<16x128xf32>
    %228 = arith.mulf %226, %227 : vector<16x128xf32>
    %cst_117 = arith.constant 4.471500e-02 : f32
    %229 = vector.broadcast %cst_117 : f32 to vector<16x128xf32>
    %230 = arith.mulf %229, %228 : vector<16x128xf32>
    %231 = arith.addf %226, %230 : vector<16x128xf32>
    %cst_118 = arith.constant 0.797884583 : f32
    %232 = vector.broadcast %cst_118 : f32 to vector<16x128xf32>
    %233 = arith.mulf %232, %231 : vector<16x128xf32>
    %234 = math.tanh %233 : vector<16x128xf32>
    %cst_119 = arith.constant 1.000000e+00 : f32
    %235 = vector.broadcast %cst_119 : f32 to vector<16x128xf32>
    %236 = arith.addf %235, %234 : vector<16x128xf32>
    %cst_120 = arith.constant 5.000000e-01 : f32
    %237 = vector.broadcast %cst_120 : f32 to vector<16x128xf32>
    %238 = arith.mulf %237, %236 : vector<16x128xf32>
    %239 = arith.mulf %226, %238 : vector<16x128xf32>
    %240 = arith.truncf %239 : vector<16x128xf32> to vector<16x128xbf16>
    %c5_121 = arith.constant 5 : index
    %c0_122 = arith.constant 0 : index
    %c0_123 = arith.constant 0 : index
    %241 = vector.load %arg3[%c5_121, %c0_122, %c0_123] : memref<6x128x128xbf16, #tpu.memory_space<vmem>>, vector<1x128x128xbf16>
    %242 = vector.shape_cast %241 : vector<1x128x128xbf16> to vector<128x128xbf16>
    %cst_124 = arith.constant dense<0.000000e+00> : vector<16x128xf32>
    %243 = tpu.matmul %240, %242, %cst_124 {dimension_numbers = #tpu.dot_dimension_numbers<[1], [0], [0], [1], [0, 0, 1, 1], [], []>} : vector<16x128xbf16>, vector<128x128xbf16>, vector<16x128xf32> -> vector<16x128xf32>
    %c16 = arith.constant 16 : index
    %c0_125 = arith.constant 0 : index
    %c0_126 = arith.constant 0 : index
    %244 = vector.load %arg4[%c16, %c0_125, %c0_126] : memref<23x1x128xf32, #tpu.memory_space<vmem>>, vector<1x1x128xf32>
    %245 = vector.shape_cast %244 : vector<1x1x128xf32> to vector<1x128xf32>
    %246 = vector.broadcast %245 : vector<1x128xf32> to vector<16x128xf32>
    %247 = arith.addf %243, %246 : vector<16x128xf32>
    %248 = arith.addf %218, %247 : vector<16x128xf32>
    %c19 = arith.constant 19 : index
    %c0_127 = arith.constant 0 : index
    %c0_128 = arith.constant 0 : index
    %249 = vector.load %arg4[%c19, %c0_127, %c0_128] : memref<23x1x128xf32, #tpu.memory_space<vmem>>, vector<1x1x128xf32>
    %250 = vector.shape_cast %249 : vector<1x1x128xf32> to vector<1x128xf32>
    %c20 = arith.constant 20 : index
    %c0_129 = arith.constant 0 : index
    %c0_130 = arith.constant 0 : index
    %251 = vector.load %arg4[%c20, %c0_129, %c0_130] : memref<23x1x128xf32, #tpu.memory_space<vmem>>, vector<1x1x128xf32>
    %252 = vector.shape_cast %251 : vector<1x1x128xf32> to vector<1x128xf32>
    %253 = arith.mulf %248, %248 : vector<16x128xf32>
    %254 = tpu.concatenate %248, %253 in 0 : vector<16x128xf32>, vector<16x128xf32> -> vector<32x128xf32>
    %c0_131 = arith.constant 0 : index
    %c0_132 = arith.constant 0 : index
    %255 = vector.load %arg7[%c0_131, %c0_132] : memref<128x128xf32, #tpu.memory_space<vmem>>, vector<128x128xf32>
    %cst_133 = arith.constant dense<0.000000e+00> : vector<32x128xf32>
    %256 = tpu.matmul %254, %255, %cst_133 {dimension_numbers = #tpu.dot_dimension_numbers<[1], [0], [0], [1], [0, 0, 1, 1], [], []>} : vector<32x128xf32>, vector<128x128xf32>, vector<32x128xf32> -> vector<32x128xf32>
    %257 = vector.extract_strided_slice %256 {offsets = [0, 0], sizes = [16, 128], strides = [1, 1]} : vector<32x128xf32> to vector<16x128xf32>
    %258 = vector.extract_strided_slice %256 {offsets = [16, 0], sizes = [16, 128], strides = [1, 1]} : vector<32x128xf32> to vector<16x128xf32>
    %259 = arith.mulf %257, %257 : vector<16x128xf32>
    %260 = arith.subf %258, %259 : vector<16x128xf32>
    %261 = arith.subf %248, %257 : vector<16x128xf32>
    %cst_134 = arith.constant 9.99999974E-6 : f32
    %262 = vector.broadcast %cst_134 : f32 to vector<16x128xf32>
    %263 = arith.addf %260, %262 : vector<16x128xf32>
    %264 = math.rsqrt %263 : vector<16x128xf32>
    %265 = arith.mulf %261, %264 : vector<16x128xf32>
    %266 = vector.broadcast %250 : vector<1x128xf32> to vector<16x128xf32>
    %267 = arith.mulf %265, %266 : vector<16x128xf32>
    %268 = vector.broadcast %252 : vector<1x128xf32> to vector<16x128xf32>
    %269 = arith.addf %267, %268 : vector<16x128xf32>
    %c21 = arith.constant 21 : index
    %c0_135 = arith.constant 0 : index
    %c0_136 = arith.constant 0 : index
    %270 = vector.load %arg4[%c21, %c0_135, %c0_136] : memref<23x1x128xf32, #tpu.memory_space<vmem>>, vector<1x1x128xf32>
    %271 = vector.shape_cast %270 : vector<1x1x128xf32> to vector<1x128xf32>
    %c22 = arith.constant 22 : index
    %c0_137 = arith.constant 0 : index
    %c0_138 = arith.constant 0 : index
    %272 = vector.load %arg4[%c22, %c0_137, %c0_138] : memref<23x1x128xf32, #tpu.memory_space<vmem>>, vector<1x1x128xf32>
    %273 = vector.shape_cast %272 : vector<1x1x128xf32> to vector<1x128xf32>
    %274 = arith.mulf %269, %269 : vector<16x128xf32>
    %275 = tpu.concatenate %269, %274 in 0 : vector<16x128xf32>, vector<16x128xf32> -> vector<32x128xf32>
    %c0_139 = arith.constant 0 : index
    %c0_140 = arith.constant 0 : index
    %276 = vector.load %arg7[%c0_139, %c0_140] : memref<128x128xf32, #tpu.memory_space<vmem>>, vector<128x128xf32>
    %cst_141 = arith.constant dense<0.000000e+00> : vector<32x128xf32>
    %277 = tpu.matmul %275, %276, %cst_141 {dimension_numbers = #tpu.dot_dimension_numbers<[1], [0], [0], [1], [0, 0, 1, 1], [], []>} : vector<32x128xf32>, vector<128x128xf32>, vector<32x128xf32> -> vector<32x128xf32>
    %278 = vector.extract_strided_slice %277 {offsets = [0, 0], sizes = [16, 128], strides = [1, 1]} : vector<32x128xf32> to vector<16x128xf32>
    %279 = vector.extract_strided_slice %277 {offsets = [16, 0], sizes = [16, 128], strides = [1, 1]} : vector<32x128xf32> to vector<16x128xf32>
    %280 = arith.mulf %278, %278 : vector<16x128xf32>
    %281 = arith.subf %279, %280 : vector<16x128xf32>
    %282 = arith.subf %269, %278 : vector<16x128xf32>
    %cst_142 = arith.constant 9.99999974E-6 : f32
    %283 = vector.broadcast %cst_142 : f32 to vector<16x128xf32>
    %284 = arith.addf %281, %283 : vector<16x128xf32>
    %285 = math.rsqrt %284 : vector<16x128xf32>
    %286 = arith.mulf %282, %285 : vector<16x128xf32>
    %287 = vector.broadcast %271 : vector<1x128xf32> to vector<16x128xf32>
    %288 = arith.mulf %286, %287 : vector<16x128xf32>
    %289 = vector.broadcast %273 : vector<1x128xf32> to vector<16x128xf32>
    %290 = arith.addf %288, %289 : vector<16x128xf32>
    %291 = arith.truncf %290 : vector<16x128xf32> to vector<16x128xbf16>
    %c0_143 = arith.constant 0 : index
    %c0_144 = arith.constant 0 : index
    %292 = vector.load %arg5[%c0_143, %c0_144] : memref<128x128xbf16, #tpu.memory_space<vmem>>, vector<128x128xbf16>
    %cst_145 = arith.constant dense<0.000000e+00> : vector<16x128xf32>
    %293 = tpu.matmul %291, %292, %cst_145 {dimension_numbers = #tpu.dot_dimension_numbers<[1], [0], [0], [1], [0, 0, 1, 1], [], []>} : vector<16x128xbf16>, vector<128x128xbf16>, vector<16x128xf32> -> vector<16x128xf32>
    %c0_146 = arith.constant 0 : index
    %c0_147 = arith.constant 0 : index
    %294 = vector.load %arg6[%c0_146, %c0_147] : memref<1x128xf32, #tpu.memory_space<vmem>>, vector<1x128xf32>
    %295 = vector.broadcast %294 : vector<1x128xf32> to vector<16x128xf32>
    %296 = arith.addf %293, %295 : vector<16x128xf32>
    %297 = vector.broadcast %14 : vector<16x1xf32> to vector<16x128xf32>
    %298 = arith.mulf %296, %297 : vector<16x128xf32>
    %c0_148 = arith.constant 0 : index
    %299 = memref.load %arg11[%c0_148] : memref<2xf32, #tpu.memory_space<smem>>
    %300 = vector.broadcast %299 : f32 to vector<16x1xf32>
    %301 = arith.mulf %4, %300 : vector<16x1xf32>
    %302 = vector.broadcast %301 : vector<16x1xf32> to vector<16x128xf32>
    %303 = arith.addf %298, %302 : vector<16x128xf32>
    %c1_149 = arith.constant 1 : index
    %304 = memref.load %arg11[%c1_149] : memref<2xf32, #tpu.memory_space<smem>>
    %305 = vector.broadcast %304 : f32 to vector<16x128xf32>
    %306 = arith.addf %303, %305 : vector<16x128xf32>
    %c0_150 = arith.constant 0 : index
    %c0_151 = arith.constant 0 : index
    %307 = vector.load %arg12[%c0_150, %c0_151] : memref<16x128xf32, #tpu.memory_space<vmem>>, vector<16x128xf32>
    tpu.vector_store %arg12[%c0_150, %c0_151], %306 {strides = array<i32>} : memref<16x128xf32, #tpu.memory_space<vmem>>, vector<16x128xf32>,
    return
  }
}

</mosaic_0001>

<llo_original>
// kernel: ensemble_forward.1
$region0: #{ensemble_forward.1}
  #allocation0 [shape = 'u32[]', space=smem, size = 0x4, offset = 0x4, fixed_abs, tag = 'smem constant byte address 0x4 - core index']
  #allocation1 [shape = 'u32[72,128]{1,0:T(1,128)}', space=vmem, size = 0x9000, scoped, tag = 'internal scratch']
  %s0 = inlined_call_operand.hbm [shape: f32[16,16], index: 0, kind: input, shape index: {}]
  %s1 = inlined_call_operand.vmem [shape: bf16[16,128], index: 1, kind: input, shape index: {}]
  %s2 = inlined_call_operand.hbm [shape: bf16[2,128,384], index: 2, kind: input, shape index: {}]
  %s3 = inlined_call_operand.hbm [shape: bf16[6,128,128], index: 3, kind: input, shape index: {}]
  %s4 = inlined_call_operand.hbm [shape: f32[23,1,128], index: 4, kind: input, shape index: {}]
  %s5 = inlined_call_operand.hbm [shape: bf16[128,128], index: 5, kind: input, shape index: {}]
  %s6 = inlined_call_operand.vmem [shape: f32[1,128], index: 6, kind: input, shape index: {}]
  %s7 = inlined_call_operand.hbm [shape: f32[128,128], index: 7, kind: input, shape index: {}]
  %s8 = inlined_call_operand.hbm [shape: f32[256,256], index: 8, kind: input, shape index: {}]
  %s9 = inlined_call_operand.hbm [shape: f32[256,128], index: 9, kind: input, shape index: {}]
  %s10 = inlined_call_operand.hbm [shape: f32[16,256], index: 10, kind: input, shape index: {}]
  %s11 = inlined_call_operand.vmem [shape: f32[2], index: 11, kind: input, shape index: {}]
  %s12 = inlined_call_operand.vmem [shape: f32[16,128], index: 12, kind: output, shape index: {}]
  %s13 = sld [smem:[#allocation0]]
  $region98: #{ensemble_forward.1} parent=0
    _
  %s15 = ssub.s32 1, %s13
  %s16 = scalar_select 0, %s15, %s13
  $region1: #{ensemble_forward.1} parent=0
    #allocation2 [shape = 'u8[8192]{0}', space=vmem, size = 0x2000, scoped, tag = 'input window, operand 0, single buffered']
    #allocation3 [shape = 's32[1]{0}', space=sflag, size = 0x4, scoped, tag = 'scoped memory for ensemble_forward.1']
    #allocation4 [shape = 's32[1]{0}', space=sflag, size = 0x4, scoped, tag = 'scoped memory for ensemble_forward.1']
    #allocation5 [shape = 'u8[196608]{0}', space=vmem, size = 0x30000, scoped, tag = 'input window, operand 2, single buffered']
    #allocation6 [shape = 's32[1]{0}', space=sflag, size = 0x4, scoped, tag = 'scoped memory for ensemble_forward.1']
    #allocation7 [shape = 'u8[196608]{0}', space=vmem, size = 0x30000, scoped, tag = 'input window, operand 3, single buffered']
    #allocation8 [shape = 'u8[11776]{0}', space=vmem, size = 0x3000, scoped, tag = 'input window, operand 4, single buffered']
    #allocation9 [shape = 's32[1]{0}', space=sflag, size = 0x4, scoped, tag = 'scoped memory for ensemble_forward.1']
    #allocation10 [shape = 'u8[32768]{0}', space=vmem, size = 0x8000, scoped, tag = 'input window, operand 5, single buffered']
    #allocation11 [shape = 'u8[65536]{0}', space=vmem, size = 0x10000, scoped, tag = 'input window, operand 7, single buffered']
    #allocation12 [shape = 's32[1]{0}', space=sflag, size = 0x4, scoped, tag = 'scoped memory for ensemble_forward.1']
    #allocation13 [shape = 'u8[262144]{0}', space=vmem, size = 0x40000, scoped, tag = 'input window, operand 8, single buffered']
    #allocation14 [shape = 'u8[131072]{0}', space=vmem, size = 0x20000, scoped, tag = 'input window, operand 9, single buffered']
    #allocation15 [shape = 's32[1]{0}', space=sflag, size = 0x4, scoped, tag = 'scoped memory for ensemble_forward.1']
    #allocation16 [shape = 'u8[16384]{0}', space=vmem, size = 0x4000, scoped, tag = 'input window, operand 10, single buffered']
    #allocation17 [shape = 'u8[512]{0}', space=smem, size = 0x200, scoped, tag = 'input window, operand 11, single buffered']
    %17 = vsyncpa [#allocation3], 0
    %18 = vsyncpa [#allocation6], 0
    %19 = vsyncpa [#allocation9], 0
    %20 = vsyncpa [#allocation12], 0
    %21 = vsyncpa [#allocation15], 0
    %22 = vsyncpa [#allocation4], 0
    // Predicated region
    $region2: #{ensemble_forward.1} parent=1 // pred_check
      _
    $region3: #{ensemble_forward.1} parent=1 // pred_check_branch
      %24 = sbr.rel (0) target = $region5
    $region4: #{ensemble_forward.1} parent=1 // pred_region
      %26 = vsyncadd [#allocation3], 0
      %s27 = sshll.u32 %s0, 4
      %s28 = int_to_ptr.hbm [resolvable:$true] %s27
      %s29 = sshll.u32 [#allocation2], 4
      %s30 = int_to_ptr.vmem [resolvable:$true] %s29
      %35 = dma.hbm_to_vmem [thread:$0]  %s28, 256, %s30, [#allocation3], 128, 128, 8
    $region5: #{ensemble_forward.1} parent=1 // pred_fallthru
      _
    // Predicated region
    $region6: #{ensemble_forward.1} parent=1 // pred_check
      _
    $region7: #{ensemble_forward.1} parent=1 // pred_check_branch
      %37 = sbr.rel (0) target = $region9
    $region8: #{ensemble_forward.1} parent=1 // pred_region
      _
    $region9: #{ensemble_forward.1} parent=1 // pred_fallthru
      _
    // Predicated region
    $region10: #{ensemble_forward.1} parent=1 // pred_check
      _
    $region11: #{ensemble_forward.1} parent=1 // pred_check_branch
      %39 = sbr.rel (0) target = $region13
    $region12: #{ensemble_forward.1} parent=1 // pred_region
      %41 = vsyncadd [#allocation6], 0
      %s42 = sshll.u32 %s2, 4
      %s43 = int_to_ptr.hbm [resolvable:$true] %s42
      %s44 = sshll.u32 [#allocation5], 4
      %s45 = int_to_ptr.vmem [resolvable:$true] %s44
      %50 = dma.hbm_to_vmem [thread:$0]  %s43, 6144, %s45, [#allocation6], 192, 192, 12
    $region13: #{ensemble_forward.1} parent=1 // pred_fallthru
      _
    // Predicated region
    $region14: #{ensemble_forward.1} parent=1 // pred_check
      _
    $region15: #{ensemble_forward.1} parent=1 // pred_check_branch
      %52 = sbr.rel (0) target = $region17
    $region16: #{ensemble_forward.1} parent=1 // pred_region
      %54 = vsyncadd [#allocation6], 0
      %s55 = sshll.u32 %s3, 4
      %s56 = int_to_ptr.hbm [resolvable:$true] %s55
      %s57 = sshll.u32 [#allocation7], 4
      %s58 = int_to_ptr.vmem [resolvable:$true] %s57
      %63 = dma.hbm_to_vmem [thread:$0]  %s56, 6144, %s58, [#allocation6], 64, 64, 4
    $region17: #{ensemble_forward.1} parent=1 // pred_fallthru
      _
    // Predicated region
    $region18: #{ensemble_forward.1} parent=1 // pred_check
      _
    $region19: #{ensemble_forward.1} parent=1 // pred_check_branch
      %65 = sbr.rel (0) target = $region21
    $region20: #{ensemble_forward.1} parent=1 // pred_region
      %67 = vsyncadd [#allocation9], 0
      %s68 = sshll.u32 %s4, 4
      %s69 = int_to_ptr.hbm [resolvable:$true] %s68
      %s70 = sshll.u32 [#allocation8], 4
      %s71 = int_to_ptr.vmem [resolvable:$true] %s70
      %76 = dma.hbm_to_vmem [thread:$0]  %s69, 368, %s71, [#allocation9], 16, 16, 1
    $region21: #{ensemble_forward.1} parent=1 // pred_fallthru
      _
    // Predicated region
    $region22: #{ensemble_forward.1} parent=1 // pred_check
      _
    $region23: #{ensemble_forward.1} parent=1 // pred_check_branch
      %78 = sbr.rel (0) target = $region25
    $region24: #{ensemble_forward.1} parent=1 // pred_region
      %80 = vsyncadd [#allocation9], 0
      %s81 = sshll.u32 %s5, 4
      %s82 = int_to_ptr.hbm [resolvable:$true] %s81
      %s83 = sshll.u32 [#allocation10], 4
      %s84 = int_to_ptr.vmem [resolvable:$true] %s83
      %89 = dma.hbm_to_vmem [thread:$0]  %s82, 1024, %s84, [#allocation9], 64, 64, 4
    $region25: #{ensemble_forward.1} parent=1 // pred_fallthru
      _
    // Predicated region
    $region26: #{ensemble_forward.1} parent=1 // pred_check
      _
    $region27: #{ensemble_forward.1} parent=1 // pred_check_branch
      %91 = sbr.rel (0) target = $region29
    $region28: #{ensemble_forward.1} parent=1 // pred_region
      _
    $region29: #{ensemble_forward.1} parent=1 // pred_fallthru
      _
    // Predicated region
    $region30: #{ensemble_forward.1} parent=1 // pred_check
      _
    $region31: #{ensemble_forward.1} parent=1 // pred_check_branch
      %93 = sbr.rel (0) target = $region33
    $region32: #{ensemble_forward.1} parent=1 // pred_region
      %95 = vsyncadd [#allocation12], 0
      %s96 = sshll.u32 %s7, 4
      %s97 = int_to_ptr.hbm [resolvable:$true] %s96
      %s98 = sshll.u32 [#allocation11], 4
      %s99 = int_to_ptr.vmem [resolvable:$true] %s98
      %104 = dma.hbm_to_vmem [thread:$0]  %s97, 2048, %s99, [#allocation12], 128, 128, 8
    $region33: #{ensemble_forward.1} parent=1 // pred_fallthru
      _
    // Predicated region
    $region34: #{ensemble_forward.1} parent=1 // pred_check
      _
    $region35: #{ensemble_forward.1} parent=1 // pred_check_branch
      %106 = sbr.rel (0) target = $region37
    $region36: #{ensemble_forward.1} parent=1 // pred_region
      %108 = vsyncadd [#allocation12], 0
      %s109 = sshll.u32 %s8, 4
      %s110 = int_to_ptr.hbm [resolvable:$true] %s109
      %s111 = sshll.u32 [#allocation13], 4
      %s112 = int_to_ptr.vmem [resolvable:$true] %s111
      %117 = dma.hbm_to_vmem [thread:$0]  %s110, 8192, %s112, [#allocation12], 256, 256, 16
    $region37: #{ensemble_forward.1} parent=1 // pred_fallthru
      _
    // Predicated region
    $region38: #{ensemble_forward.1} parent=1 // pred_check
      _
    $region39: #{ensemble_forward.1} parent=1 // pred_check_branch
      %119 = sbr.rel (0) target = $region41
    $region40: #{ensemble_forward.1} parent=1 // pred_region
      %121 = vsyncadd [#allocation15], 0
      %s122 = sshll.u32 %s9, 4
      %s123 = int_to_ptr.hbm [resolvable:$true] %s122
      %s124 = sshll.u32 [#allocation14], 4
      %s125 = int_to_ptr.vmem [resolvable:$true] %s124
      %130 = dma.hbm_to_vmem [thread:$0]  %s123, 4096, %s125, [#allocation15], 128, 128, 8
    $region41: #{ensemble_forward.1} parent=1 // pred_fallthru
      _
    // Predicated region
    $region42: #{ensemble_forward.1} parent=1 // pred_check
      _
    $region43: #{ensemble_forward.1} parent=1 // pred_check_branch
      %132 = sbr.rel (0) target = $region45
    $region44: #{ensemble_forward.1} parent=1 // pred_region
      %134 = vsyncadd [#allocation15], 0
      %s135 = sshll.u32 %s10, 4
      %s136 = int_to_ptr.hbm [resolvable:$true] %s135
      %s137 = sshll.u32 [#allocation16], 4
      %s138 = int_to_ptr.vmem [resolvable:$true] %s137
      %143 = dma.hbm_to_vmem [thread:$0]  %s136, 512, %s138, [#allocation15], 256, 256, 16
    $region45: #{ensemble_forward.1} parent=1 // pred_fallthru
      _
    // Predicated region
    $region46: #{ensemble_forward.1} parent=1 // pred_check
      _
    $region47: #{ensemble_forward.1} parent=1 // pred_check_branch
      %145 = sbr.rel (0) target = $region49
    $region48: #{ensemble_forward.1} parent=1 // pred_region
      %147 = vsyncadd [#allocation4], 0
      %s149 = sshll.u32 %s11, 4
      %s150 = int_to_ptr.vmem [resolvable:$true] %s149
      %152 = dma.vmem_to_smem %s150, 16, [#allocation17], [#allocation4]
    $region49: #{ensemble_forward.1} parent=1 // pred_fallthru
      _
    // Predicated region
    $region50: #{ensemble_forward.1} parent=1 // pred_check
      _
    $region51: #{ensemble_forward.1} parent=1 // pred_check_branch
      %154 = sbr.rel (0) target = $region53
    $region52: #{ensemble_forward.1} parent=1 // pred_region
      %156 = dma.done [#allocation3], 256
    $region53: #{ensemble_forward.1} parent=1 // pred_fallthru
      _
    // Predicated region
    $region54: #{ensemble_forward.1} parent=1 // pred_check
      _
    $region55: #{ensemble_forward.1} parent=1 // pred_check_branch
      %158 = sbr.rel (0) target = $region57
    $region56: #{ensemble_forward.1} parent=1 // pred_region
      %160 = dma.done [#allocation6], 6144
    $region57: #{ensemble_forward.1} parent=1 // pred_fallthru
      _
    // Predicated region
    $region58: #{ensemble_forward.1} parent=1 // pred_check
      _
    $region59: #{ensemble_forward.1} parent=1 // pred_check_branch
      %162 = sbr.rel (0) target = $region61
    $region60: #{ensemble_forward.1} parent=1 // pred_region
      %164 = dma.done [#allocation6], 6144
    $region61: #{ensemble_forward.1} parent=1 // pred_fallthru
      _
    // Predicated region
    $region62: #{ensemble_forward.1} parent=1 // pred_check
      _
    $region63: #{ensemble_forward.1} parent=1 // pred_check_branch
      %166 = sbr.rel (0) target = $region65
    $region64: #{ensemble_forward.1} parent=1 // pred_region
      %168 = dma.done [#allocation9], 368
    $region65: #{ensemble_forward.1} parent=1 // pred_fallthru
      _
    // Predicated region
    $region66: #{ensemble_forward.1} parent=1 // pred_check
      _
    $region67: #{ensemble_forward.1} parent=1 // pred_check_branch
      %170 = sbr.rel (0) target = $region69
    $region68: #{ensemble_forward.1} parent=1 // pred_region
      %172 = dma.done [#allocation9], 1024
    $region69: #{ensemble_forward.1} parent=1 // pred_fallthru
      _
    // Predicated region
    $region70: #{ensemble_forward.1} parent=1 // pred_check
      _
    $region71: #{ensemble_forward.1} parent=1 // pred_check_branch
      %174 = sbr.rel (0) target = $region73
    $region72: #{ensemble_forward.1} parent=1 // pred_region
      %176 = dma.done [#allocation12], 2048
    $region73: #{ensemble_forward.1} parent=1 // pred_fallthru
      _
    // Predicated region
    $region74: #{ensemble_forward.1} parent=1 // pred_check
      _
    $region75: #{ensemble_forward.1} parent=1 // pred_check_branch
      %178 = sbr.rel (0) target = $region77
    $region76: #{ensemble_forward.1} parent=1 // pred_region
      %180 = dma.done [#allocation12], 8192
    $region77: #{ensemble_forward.1} parent=1 // pred_fallthru
      _
    // Predicated region
    $region78: #{ensemble_forward.1} parent=1 // pred_check
      _
    $region79: #{ensemble_forward.1} parent=1 // pred_check_branch
      %182 = sbr.rel (0) target = $region81
    $region80: #{ensemble_forward.1} parent=1 // pred_region
      %184 = dma.done [#allocation15], 4096
    $region81: #{ensemble_forward.1} parent=1 // pred_fallthru
      _
    // Predicated region
    $region82: #{ensemble_forward.1} parent=1 // pred_check
      _
    $region83: #{ensemble_forward.1} parent=1 // pred_check_branch
      %186 = sbr.rel (0) target = $region85
    $region84: #{ensemble_forward.1} parent=1 // pred_region
      %188 = dma.done [#allocation15], 512
    $region85: #{ensemble_forward.1} parent=1 // pred_fallthru
      _
    // Predicated region
    $region86: #{ensemble_forward.1} parent=1 // pred_check
      _
    $region87: #{ensemble_forward.1} parent=1 // pred_check_branch
      %190 = sbr.rel (0) target = $region89
    $region88: #{ensemble_forward.1} parent=1 // pred_region
      %192 = dma.done [#allocation4], 16
    $region89: #{ensemble_forward.1} parent=1 // pred_fallthru
      _
    %193 = sfence
    %v195 = vld [vmem:[#allocation2] sm:$0xff]
    %v196 = vld [vmem:[#allocation2 + $0x8] sm:$0xff]
    %vm197 = vcmask 130048
    %v198 = vsel %vm197, %v195, 0.0
    %199 = vadd.xlane.f32.xlu0 %v198
    %v200 = vpop.xlane.xlu0 %199
    %v201 = vsel %vm197, %v196, 0.0
    %202 = vadd.xlane.f32.xlu0 %v201
    %v203 = vpop.xlane.xlu0 %202
    %v204 = vrcp.pop 16.0
    %v205 = vmul.f32 16.0, %v204
    %v206 = vsub.f32 1.0, %v205
    %v207 = vmul.f32 %v204, %v206
    %v208 = vadd.f32 %v204, %v207
    %vm209 = vweird.f32 %v204
    %v210 = vsel %vm209, %v204, %v208
    %v211 = vmul.f32 %v200, %v210
    %v212 = vmul.f32 %v203, %v210
    %v213 = vsub.f32 %v195, %v211
    %v214 = vsub.f32 %v196, %v212
    %v215 = vmul.f32 %v213, %v213
    %v216 = vmul.f32 %v214, %v214
    %v217 = vsel %vm197, %v215, 0.0
    %218 = vadd.xlane.f32.xlu0 %v217
    %v219 = vpop.xlane.xlu0 %218
    %v220 = vsel %vm197, %v216, 0.0
    %221 = vadd.xlane.f32.xlu0 %v220
    %v222 = vpop.xlane.xlu0 %221
    %v223 = vmul.f32 %v219, %v210
    %v224 = vmul.f32 %v222, %v210
    %v225 = vadd.f32 %v223, 1e-05
    %v226 = vadd.f32 %v224, 1e-05
    %v227 = vrsqrt.pop %v225
    %v228 = vmul.f32 %v227, %v225
    %v229 = vmul.f32 %v228, %v227
    %v230 = vmul.f32 0.5, %v229
    %v231 = vsub.f32 1.5, %v230
    %v232 = vmul.f32 %v227, %v231
    %v233 = vmul.f32 %v225, %v232
    %vm234 = vcmp.eq.f32.partialorder %v225, inf
    %v235 = vsel %vm234, %v225, %v233
    %vm236 = vcmp.eq.f32.partialorder %v225, 0.0
    %v237 = vand.u32 %v225, 2147483648
    %v238 = vsel %vm236, %v237, %v235
    %v239 = vrsqrt.pop %v226
    %v240 = vmul.f32 %v239, %v226
    %v241 = vmul.f32 %v240, %v239
    %v242 = vmul.f32 0.5, %v241
    %v243 = vsub.f32 1.5, %v242
    %v244 = vmul.f32 %v239, %v243
    %v245 = vmul.f32 %v226, %v244
    %vm246 = vcmp.eq.f32.partialorder %v226, inf
    %v247 = vsel %vm246, %v226, %v245
    %vm248 = vcmp.eq.f32.partialorder %v226, 0.0
    %v249 = vand.u32 %v226, 2147483648
    %v250 = vsel %vm248, %v249, %v247
    %v251 = vrcp.pop %v238
    %v252 = vmul.f32 %v238, %v251
    %v253 = vsub.f32 1.0, %v252
    %v254 = vmul.f32 %v251, %v253
    %v255 = vadd.f32 %v251, %v254
    %vm256 = vweird.f32 %v238
    %vm257 = vweird.f32 %v251
    %vm258 = vmor %vm256, %vm257
    %v259 = vsel %vm258, %v251, %v255
    %v260 = vand.u32 2147483647, %v238
    %vm261 = vcmp.eq.f32.partialorder %v260, 8.507059e+37
    %v262 = vand.u32 %v238, 2147483648
    %v263 = vor.u32 1.1754944e-38, %v262
    %v264 = vsel %vm261, %v263, %v259
    %v265 = vmul.f32 %v213, %v264
    %v266 = vrcp.pop %v250
    %v267 = vmul.f32 %v250, %v266
    %v268 = vsub.f32 1.0, %v267
    %v269 = vmul.f32 %v266, %v268
    %v270 = vadd.f32 %v266, %v269
    %vm271 = vweird.f32 %v250
    %vm272 = vweird.f32 %v266
    %vm273 = vmor %vm271, %vm272
    %v274 = vsel %vm273, %v266, %v270
    %v275 = vand.u32 2147483647, %v250
    %vm276 = vcmp.eq.f32.partialorder %v275, 8.507059e+37
    %v277 = vand.u32 %v250, 2147483648
    %v278 = vor.u32 1.1754944e-38, %v277
    %v279 = vsel %vm276, %v278, %v274
    %v280 = vmul.f32 %v214, %v279
    %v281 = vpack.c.bf16 %v280, %v265
    %v282 = vld [vmem:[%s1] sm:$0xf]
    %v283 = vld [vmem:[%s1 + $0x4] sm:$0xf]
    %v284 = vld [vmem:[#allocation8] sm:$0x1]
    %v286 = vperm.slane %v284, 0
    %v290 = vunpack.c.l.b16 %v282
    %v291 = vunpack.c.l.b16 %v283
    %v292 = vpack.c.b16 %v291, %v290
    %v295 = vsel %vm197, %v281, 0
    %297 = vmatpush.bf16.msra.mxu0 0
    %298 = vmatpush.bf16.msra.mxu0 0
    %299 = vmatpush.bf16.msra.mxu0 0
    %300 = vmatpush.bf16.msra.mxu0 0
    %301 = vmatpush.bf16.msra.mxu0 0
    %302 = vmatpush.bf16.msra.mxu0 0
    %303 = vmatpush.bf16.msra.mxu0 0
    %304 = vmatpush.bf16.msra.mxu0 %v292
    %305 = vmatmul.bf16.gmra.mxu0 %v295
    %v306 = vpop.f32.mrf.mxu0
    %v307 = vadd.f32 %v286, %v306
    %v308 = vpop.f32.mrf.mxu0
    %v309 = vadd.f32 %v286, %v308
    %310 = vdwg.mxu0
    %v311 = vpack.c.bf16 %v309, %v307
    %v312 = vld [vmem:[#allocation5] sm:$0xff]
    %v313 = vld [vmem:[#allocation5 + $0x8] sm:$0xf]
    %v314 = vld [vmem:[#allocation5 + $0xc] sm:$0xff]
    %v315 = vld [vmem:[#allocation5 + $0x14] sm:$0xf]
    %v316 = vld [vmem:[#allocation5 + $0x18] sm:$0xff]
    %v317 = vld [vmem:[#allocation5 + $0x20] sm:$0xf]
    %v318 = vld [vmem:[#allocation5 + $0x24] sm:$0xff]
    %v319 = vld [vmem:[#allocation5 + $0x2c] sm:$0xf]
    %v320 = vld [vmem:[#allocation5 + $0x30] sm:$0xff]
    %v321 = vld [vmem:[#allocation5 + $0x38] sm:$0xf]
    %v322 = vld [vmem:[#allocation5 + $0x3c] sm:$0xff]
    %v323 = vld [vmem:[#allocation5 + $0x44] sm:$0xf]
    %v324 = vld [vmem:[#allocation5 + $0x48] sm:$0xff]
    %v325 = vld [vmem:[#allocation5 + $0x50] sm:$0xf]
    %v326 = vld [vmem:[#allocation5 + $0x54] sm:$0xff]
    %v327 = vld [vmem:[#allocation5 + $0x5c] sm:$0xf]
    %v328 = vld [vmem:[#allocation5 + $0x60] sm:$0xff]
    %v329 = vld [vmem:[#allocation5 + $0x68] sm:$0xf]
    %v330 = vld [vmem:[#allocation5 + $0x6c] sm:$0xff]
    %v331 = vld [vmem:[#allocation5 + $0x74] sm:$0xf]
    %v332 = vld [vmem:[#allocation5 + $0x78] sm:$0xff]
    %v333 = vld [vmem:[#allocation5 + $0x80] sm:$0xf]
    %v334 = vld [vmem:[#allocation5 + $0x84] sm:$0xff]
    %v335 = vld [vmem:[#allocation5 + $0x8c] sm:$0xf]
    %v336 = vld [vmem:[#allocation5 + $0x90] sm:$0xff]
    %v337 = vld [vmem:[#allocation5 + $0x98] sm:$0xf]
    %v338 = vld [vmem:[#allocation5 + $0x9c] sm:$0xff]
    %v339 = vld [vmem:[#allocation5 + $0xa4] sm:$0xf]
    %v340 = vld [vmem:[#allocation5 + $0xa8] sm:$0xff]
    %v341 = vld [vmem:[#allocation5 + $0xb0] sm:$0xf]
    %v342 = vld [vmem:[#allocation5 + $0xb4] sm:$0xff]
    %v343 = vld [vmem:[#allocation5 + $0xbc] sm:$0xf]
    %v376 = vunpack.c.l.b16 %v312
    %v377 = vunpack.c.h.b16 %v312
    %v378 = vunpack.c.l.b16 %v313
    %v379 = vunpack.c.l.b16 %v314
    %v380 = vunpack.c.h.b16 %v314
    %v381 = vunpack.c.l.b16 %v315
    %v382 = vunpack.c.l.b16 %v316
    %v383 = vunpack.c.h.b16 %v316
    %v384 = vunpack.c.l.b16 %v317
    %v385 = vunpack.c.l.b16 %v318
    %v386 = vunpack.c.h.b16 %v318
    %v387 = vunpack.c.l.b16 %v319
    %v388 = vunpack.c.l.b16 %v320
    %v389 = vunpack.c.h.b16 %v320
    %v390 = vunpack.c.l.b16 %v321
    %v391 = vunpack.c.l.b16 %v322
    %v392 = vunpack.c.h.b16 %v322
    %v393 = vunpack.c.l.b16 %v323
    %v394 = vunpack.c.l.b16 %v324
    %v395 = vunpack.c.h.b16 %v324
    %v396 = vunpack.c.l.b16 %v325
    %v397 = vunpack.c.l.b16 %v326
    %v398 = vunpack.c.h.b16 %v326
    %v399 = vunpack.c.l.b16 %v327
    %v400 = vunpack.c.l.b16 %v328
    %v401 = vunpack.c.h.b16 %v328
    %v402 = vunpack.c.l.b16 %v329
    %v403 = vunpack.c.l.b16 %v330
    %v404 = vunpack.c.h.b16 %v330
    %v405 = vunpack.c.l.b16 %v331
    %v406 = vunpack.c.l.b16 %v332
    %v407 = vunpack.c.h.b16 %v332
    %v408 = vunpack.c.l.b16 %v333
    %v409 = vunpack.c.l.b16 %v334
    %v410 = vunpack.c.h.b16 %v334
    %v411 = vunpack.c.l.b16 %v335
    %v412 = vunpack.c.l.b16 %v336
    %v413 = vunpack.c.h.b16 %v336
    %v414 = vunpack.c.l.b16 %v337
    %v415 = vunpack.c.l.b16 %v338
    %v416 = vunpack.c.h.b16 %v338
    %v417 = vunpack.c.l.b16 %v339
    %v418 = vunpack.c.l.b16 %v340
    %v419 = vunpack.c.h.b16 %v340
    %v420 = vunpack.c.l.b16 %v341
    %v421 = vunpack.c.l.b16 %v342
    %v422 = vunpack.c.h.b16 %v342
    %v423 = vunpack.c.l.b16 %v343
    %v424 = vpack.c.b16 %v379, %v376
    %v425 = vpack.c.b16 %v380, %v377
    %v426 = vpack.c.b16 %v381, %v378
    %v427 = vpack.c.b16 %v385, %v382
    %v428 = vpack.c.b16 %v386, %v383
    %v429 = vpack.c.b16 %v387, %v384
    %v430 = vpack.c.b16 %v391, %v388
    %v431 = vpack.c.b16 %v392, %v389
    %v432 = vpack.c.b16 %v393, %v390
    %v433 = vpack.c.b16 %v397, %v394
    %v434 = vpack.c.b16 %v398, %v395
    %v435 = vpack.c.b16 %v399, %v396
    %v436 = vpack.c.b16 %v403, %v400
    %v437 = vpack.c.b16 %v404, %v401
    %v438 = vpack.c.b16 %v405, %v402
    %v439 = vpack.c.b16 %v409, %v406
    %v440 = vpack.c.b16 %v410, %v407
    %v441 = vpack.c.b16 %v411, %v408
    %v442 = vpack.c.b16 %v415, %v412
    %v443 = vpack.c.b16 %v416, %v413
    %v444 = vpack.c.b16 %v417, %v414
    %v445 = vpack.c.b16 %v421, %v418
    %v446 = vpack.c.b16 %v422, %v419
    %v447 = vpack.c.b16 %v423, %v420
    %472 = vmatpush.bf16.msra.mxu0 %v445
    %473 = vmatpush.bf16.msra.mxu0 %v442
    %474 = vmatpush.bf16.msra.mxu0 %v439
    %475 = vmatpush.bf16.msra.mxu0 %v436
    %476 = vmatpush.bf16.msra.mxu0 %v433
    %477 = vmatpush.bf16.msra.mxu0 %v430
    %478 = vmatpush.bf16.msra.mxu0 %v427
    %479 = vmatpush.bf16.msra.mxu0 %v424
    %480 = vmatmul.bf16.gmra.mxu0 %v311
    %v481 = vpop.f32.mrf.mxu0
    %v482 = vadd.f32 0.0, %v481
    %v483 = vpop.f32.mrf.mxu0
    %v484 = vadd.f32 0.0, %v483
    %485 = vdwg.mxu0
    %486 = vmatpush.bf16.msra.mxu0 %v446
    %487 = vmatpush.bf16.msra.mxu0 %v443
    %488 = vmatpush.bf16.msra.mxu0 %v440
    %489 = vmatpush.bf16.msra.mxu0 %v437
    %490 = vmatpush.bf16.msra.mxu0 %v434
    %491 = vmatpush.bf16.msra.mxu0 %v431
    %492 = vmatpush.bf16.msra.mxu0 %v428
    %493 = vmatpush.bf16.msra.mxu0 %v425
    %494 = vmatmul.bf16.gmra.mxu0 %v311
    %v495 = vpop.f32.mrf.mxu0
    %v496 = vadd.f32 0.0, %v495
    %v497 = vpop.f32.mrf.mxu0
    %v498 = vadd.f32 0.0, %v497
    %499 = vdwg.mxu0
    %500 = vmatpush.bf16.msra.mxu0 %v447
    %501 = vmatpush.bf16.msra.mxu0 %v444
    %502 = vmatpush.bf16.msra.mxu0 %v441
    %503 = vmatpush.bf16.msra.mxu0 %v438
    %504 = vmatpush.bf16.msra.mxu0 %v435
    %505 = vmatpush.bf16.msra.mxu0 %v432
    %506 = vmatpush.bf16.msra.mxu0 %v429
    %507 = vmatpush.bf16.msra.mxu0 %v426
    %508 = vmatmul.bf16.gmra.mxu0 %v311
    %v509 = vpop.f32.mrf.mxu0
    %v510 = vadd.f32 0.0, %v509
    %v511 = vpop.f32.mrf.mxu0
    %v512 = vadd.f32 0.0, %v511
    %513 = vdwg.mxu0
    %s514 = scalar_lea.vmem [#allocation8], 1
    %v515 = vld [vmem:[%s514] sm:$0x1]
    %v517 = vperm.slane %v515, 0
    %v519 = vadd.f32 %v482, %v517
    %v520 = vadd.f32 %v484, %v517
    %s521 = scalar_lea.vmem [#allocation8], 2
    %v522 = vld [vmem:[%s521] sm:$0x1]
    %v524 = vperm.slane %v522, 0
    %v526 = vadd.f32 %v496, %v524
    %v527 = vadd.f32 %v498, %v524
    %s528 = scalar_lea.vmem [#allocation8], 3
    %v529 = vld [vmem:[%s528] sm:$0x1]
    %v531 = vperm.slane %v529, 0
    %v533 = vadd.f32 %v510, %v531
    %v534 = vadd.f32 %v512, %v531
    %v535 = vld [vmem:[#allocation14] sm:$0xff]
    %v536 = vld [vmem:[#allocation14 + $0x8] sm:$0xff]
    %v537 = vld [vmem:[#allocation14 + $0x10] sm:$0xff]
    %v538 = vld [vmem:[#allocation14 + $0x18] sm:$0xff]
    %v539 = vld [vmem:[#allocation14 + $0x20] sm:$0xff]
    %v540 = vld [vmem:[#allocation14 + $0x28] sm:$0xff]
    %v541 = vld [vmem:[#allocation14 + $0x30] sm:$0xff]
    %v542 = vld [vmem:[#allocation14 + $0x38] sm:$0xff]
    %v543 = vld [vmem:[#allocation14 + $0x40] sm:$0xff]
    %v544 = vld [vmem:[#allocation14 + $0x48] sm:$0xff]
    %v545 = vld [vmem:[#allocation14 + $0x50] sm:$0xff]
    %v546 = vld [vmem:[#allocation14 + $0x58] sm:$0xff]
    %v547 = vld [vmem:[#allocation14 + $0x60] sm:$0xff]
    %v548 = vld [vmem:[#allocation14 + $0x68] sm:$0xff]
    %v549 = vld [vmem:[#allocation14 + $0x70] sm:$0xff]
    %v550 = vld [vmem:[#allocation14 + $0x78] sm:$0xff]
    %v551 = vld [vmem:[#allocation14 + $0x80] sm:$0xff]
    %v552 = vld [vmem:[#allocation14 + $0x88] sm:$0xff]
    %v553 = vld [vmem:[#allocation14 + $0x90] sm:$0xff]
    %v554 = vld [vmem:[#allocation14 + $0x98] sm:$0xff]
    %v555 = vld [vmem:[#allocation14 + $0xa0] sm:$0xff]
    %v556 = vld [vmem:[#allocation14 + $0xa8] sm:$0xff]
    %v557 = vld [vmem:[#allocation14 + $0xb0] sm:$0xff]
    %v558 = vld [vmem:[#allocation14 + $0xb8] sm:$0xff]
    %v559 = vld [vmem:[#allocation14 + $0xc0] sm:$0xff]
    %v560 = vld [vmem:[#allocation14 + $0xc8] sm:$0xff]
    %v561 = vld [vmem:[#allocation14 + $0xd0] sm:$0xff]
    %v562 = vld [vmem:[#allocation14 + $0xd8] sm:$0xff]
    %v563 = vld [vmem:[#allocation14 + $0xe0] sm:$0xff]
    %v564 = vld [vmem:[#allocation14 + $0xe8] sm:$0xff]
    %v565 = vld [vmem:[#allocation14 + $0xf0] sm:$0xff]
    %v566 = vld [vmem:[#allocation14 + $0xf8] sm:$0xff]
    %v567 = vmul.f32 %v526, %v535
    %v568 = vmul.f32 %v527, %v536
    %v569 = vmul.f32 %v526, %v537
    %v570 = vmul.f32 %v527, %v538
    %v571 = vmul.f32 %v526, %v539
    %v572 = vmul.f32 %v527, %v540
    %v573 = vmul.f32 %v526, %v541
    %v574 = vmul.f32 %v527, %v542
    %v575 = vmul.f32 %v526, %v543
    %v576 = vmul.f32 %v527, %v544
    %v577 = vmul.f32 %v526, %v545
    %v578 = vmul.f32 %v527, %v546
    %v579 = vmul.f32 %v526, %v547
    %v580 = vmul.f32 %v527, %v548
    %v581 = vmul.f32 %v526, %v549
    %v582 = vmul.f32 %v527, %v550
    %v583 = vmul.f32 %v526, %v551
    %v584 = vmul.f32 %v527, %v552
    %v585 = vmul.f32 %v526, %v553
    %v586 = vmul.f32 %v527, %v554
    %v587 = vmul.f32 %v526, %v555
    %v588 = vmul.f32 %v527, %v556
    %v589 = vmul.f32 %v526, %v557
    %v590 = vmul.f32 %v527, %v558
    %v591 = vmul.f32 %v526, %v559
    %v592 = vmul.f32 %v527, %v560
    %v593 = vmul.f32 %v526, %v561
    %v594 = vmul.f32 %v527, %v562
    %v595 = vmul.f32 %v526, %v563
    %v596 = vmul.f32 %v527, %v564
    %v597 = vmul.f32 %v526, %v565
    %v598 = vmul.f32 %v527, %v566
    %599 = vmatpush.xpose.msra.mxu0 %v582
    %600 = vmatpush.xpose.msra.mxu0 %v581
    %601 = vmatpush.xpose.msra.mxu0 %v580
    %602 = vmatpush.xpose.msra.mxu0 %v579
    %603 = vmatpush.xpose.msra.mxu0 %v578
    %604 = vmatpush.xpose.msra.mxu0 %v577
    %605 = vmatpush.xpose.msra.mxu0 %v576
    %606 = vmatpush.xpose.msra.mxu0 %v575
    %607 = vmatpush.xpose.msra.mxu0 %v574
    %608 = vmatpush.xpose.msra.mxu0 %v573
    %609 = vmatpush.xpose.msra.mxu0 %v572
    %610 = vmatpush.xpose.msra.mxu0 %v571
    %611 = vmatpush.xpose.msra.mxu0 %v570
    %612 = vmatpush.xpose.msra.mxu0 %v569
    %613 = vmatpush.xpose.msra.mxu0 %v568
    %614 = vmatpush.xpose.msra.mxu0 %v567
    %615 = vmatmul.f32.gmra.mxu0 %v519
    %v616 = vpop.f32.mrf.mxu0
    %v617 = vadd.f32 0.0, %v616
    %618 = vmatmul.f32.gmra.mxu0 %v520
    %v619 = vpop.f32.mrf.mxu0
    %v620 = vadd.f32 0.0, %v619
    %621 = vdwg.mxu0
    %622 = vmatpush.xpose.msra.mxu0 %v598
    %623 = vmatpush.xpose.msra.mxu0 %v597
    %624 = vmatpush.xpose.msra.mxu0 %v596
    %625 = vmatpush.xpose.msra.mxu0 %v595
    %626 = vmatpush.xpose.msra.mxu0 %v594
    %627 = vmatpush.xpose.msra.mxu0 %v593
    %628 = vmatpush.xpose.msra.mxu0 %v592
    %629 = vmatpush.xpose.msra.mxu0 %v591
    %630 = vmatpush.xpose.msra.mxu0 %v590
    %631 = vmatpush.xpose.msra.mxu0 %v589
    %632 = vmatpush.xpose.msra.mxu0 %v588
    %633 = vmatpush.xpose.msra.mxu0 %v587
    %634 = vmatpush.xpose.msra.mxu0 %v586
    %635 = vmatpush.xpose.msra.mxu0 %v585
    %636 = vmatpush.xpose.msra.mxu0 %v584
    %637 = vmatpush.xpose.msra.mxu0 %v583
    %638 = vmatmul.f32.gmra.mxu0 %v519
    %v639 = vpop.f32.mrf.mxu0
    %v640 = vadd.f32 0.0, %v639
    %641 = vmatmul.f32.gmra.mxu0 %v520
    %v642 = vpop.f32.mrf.mxu0
    %v643 = vadd.f32 0.0, %v642
    %644 = vdwg.mxu0
    %v645 = vmul.f32 %v617, 0.35355338
    %v646 = vmul.f32 %v640, 0.35355338
    %v647 = vmul.f32 %v620, 0.35355338
    %v648 = vmul.f32 %v643, 0.35355338
    %v649 = vld [vmem:[#allocation16] sm:$0xff]
    %v650 = vld [vmem:[#allocation16 + $0x8] sm:$0xff]
    %v651 = vld [vmem:[#allocation16 + $0x10] sm:$0xff]
    %v652 = vld [vmem:[#allocation16 + $0x18] sm:$0xff]
    %v653 = vadd.f32 %v645, %v649
    %v654 = vadd.f32 %v646, %v650
    %v655 = vadd.f32 %v647, %v651
    %v656 = vadd.f32 %v648, %v652
    %v657 = vmax.f32 %v653, %v654
    %658 = vmax.xlane.f32.xlu0 %v657
    %v659 = vpop.xlane.xlu0 %658
    %v660 = vmax.f32 %v655, %v656
    %661 = vmax.xlane.f32.xlu0 %v660
    %v662 = vpop.xlane.xlu0 %661
    %v663 = vsub.f32 %v653, %v659
    %v664 = vsub.f32 %v654, %v659
    %v665 = vsub.f32 %v655, %v662
    %v666 = vsub.f32 %v656, %v662
    %v667 = vmul.f32 %v663, 1.442695
    %v668 = vpow.pop %v667
    %v669 = vmul.f32 %v664, 1.442695
    %v670 = vpow.pop %v669
    %v671 = vmul.f32 %v665, 1.442695
    %v672 = vpow.pop %v671
    %v673 = vmul.f32 %v666, 1.442695
    %v674 = vpow.pop %v673
    %v675 = vld [vmem:[#allocation13] sm:$0xff]
    %v676 = vld [vmem:[#allocation13 + $0x8] sm:$0xff]
    %v677 = vld [vmem:[#allocation13 + $0x10] sm:$0xff]
    %v678 = vld [vmem:[#allocation13 + $0x18] sm:$0xff]
    %v679 = vld [vmem:[#allocation13 + $0x20] sm:$0xff]
    %v680 = vld [vmem:[#allocation13 + $0x28] sm:$0xff]
    %v681 = vld [vmem:[#allocation13 + $0x30] sm:$0xff]
    %v682 = vld [vmem:[#allocation13 + $0x38] sm:$0xff]
    %v683 = vld [vmem:[#allocation13 + $0x40] sm:$0xff]
    %v684 = vld [vmem:[#allocation13 + $0x48] sm:$0xff]
    %v685 = vld [vmem:[#allocation13 + $0x50] sm:$0xff]
    %v686 = vld [vmem:[#allocation13 + $0x58] sm:$0xff]
    %v687 = vld [vmem:[#allocation13 + $0x60] sm:$0xff]
    %v688 = vld [vmem:[#allocation13 + $0x68] sm:$0xff]
    %v689 = vld [vmem:[#allocation13 + $0x70] sm:$0xff]
    %v690 = vld [vmem:[#allocation13 + $0x78] sm:$0xff]
    %v691 = vld [vmem:[#allocation13 + $0x80] sm:$0xff]
    %v692 = vld [vmem:[#allocation13 + $0x88] sm:$0xff]
    %v693 = vld [vmem:[#allocation13 + $0x90] sm:$0xff]
    %v694 = vld [vmem:[#allocation13 + $0x98] sm:$0xff]
    %v695 = vld [vmem:[#allocation13 + $0xa0] sm:$0xff]
    %v696 = vld [vmem:[#allocation13 + $0xa8] sm:$0xff]
    %v697 = vld [vmem:[#allocation13 + $0xb0] sm:$0xff]
    %v698 = vld [vmem:[#allocation13 + $0xb8] sm:$0xff]
    %v699 = vld [vmem:[#allocation13 + $0xc0] sm:$0xff]
    %v700 = vld [vmem:[#allocation13 + $0xc8] sm:$0xff]
    %v701 = vld [vmem:[#allocation13 + $0xd0] sm:$0xff]
    %v702 = vld [vmem:[#allocation13 + $0xd8] sm:$0xff]
    %v703 = vld [vmem:[#allocation13 + $0xe0] sm:$0xff]
    %v704 = vld [vmem:[#allocation13 + $0xe8] sm:$0xff]
    %v705 = vld [vmem:[#allocation13 + $0xf0] sm:$0xff]
    %v706 = vld [vmem:[#allocation13 + $0xf8] sm:$0xff]
    %v707 = vld [vmem:[#allocation13 + $0x100] sm:$0xff]
    %v708 = vld [vmem:[#allocation13 + $0x108] sm:$0xff]
    %v709 = vld [vmem:[#allocation13 + $0x110] sm:$0xff]
    %v710 = vld [vmem:[#allocation13 + $0x118] sm:$0xff]
    %v711 = vld [vmem:[#allocation13 + $0x120] sm:$0xff]
    %v712 = vld [vmem:[#allocation13 + $0x128] sm:$0xff]
    %v713 = vld [vmem:[#allocation13 + $0x130] sm:$0xff]
    %v714 = vld [vmem:[#allocation13 + $0x138] sm:$0xff]
    %v715 = vld [vmem:[#allocation13 + $0x140] sm:$0xff]
    %v716 = vld [vmem:[#allocation13 + $0x148] sm:$0xff]
    %v717 = vld [vmem:[#allocation13 + $0x150] sm:$0xff]
    %v718 = vld [vmem:[#allocation13 + $0x158] sm:$0xff]
    %v719 = vld [vmem:[#allocation13 + $0x160] sm:$0xff]
    %v720 = vld [vmem:[#allocation13 + $0x168] sm:$0xff]
    %v721 = vld [vmem:[#allocation13 + $0x170] sm:$0xff]
    %v722 = vld [vmem:[#allocation13 + $0x178] sm:$0xff]
    %v723 = vld [vmem:[#allocation13 + $0x180] sm:$0xff]
    %v724 = vld [vmem:[#allocation13 + $0x188] sm:$0xff]
    %v725 = vld [vmem:[#allocation13 + $0x190] sm:$0xff]
    %v726 = vld [vmem:[#allocation13 + $0x198] sm:$0xff]
    %v727 = vld [vmem:[#allocation13 + $0x1a0] sm:$0xff]
    %v728 = vld [vmem:[#allocation13 + $0x1a8] sm:$0xff]
    %v729 = vld [vmem:[#allocation13 + $0x1b0] sm:$0xff]
    %v730 = vld [vmem:[#allocation13 + $0x1b8] sm:$0xff]
    %v731 = vld [vmem:[#allocation13 + $0x1c0] sm:$0xff]
    %v732 = vld [vmem:[#allocation13 + $0x1c8] sm:$0xff]
    %v733 = vld [vmem:[#allocation13 + $0x1d0] sm:$0xff]
    %v734 = vld [vmem:[#allocation13 + $0x1d8] sm:$0xff]
    %v735 = vld [vmem:[#allocation13 + $0x1e0] sm:$0xff]
    %v736 = vld [vmem:[#allocation13 + $0x1e8] sm:$0xff]
    %v737 = vld [vmem:[#allocation13 + $0x1f0] sm:$0xff]
    %v738 = vld [vmem:[#allocation13 + $0x1f8] sm:$0xff]
    %739 = vmatpush.msra.mxu0 %v705
    %740 = vmatpush.msra.mxu0 %v703
    %741 = vmatpush.msra.mxu0 %v701
    %742 = vmatpush.msra.mxu0 %v699
    %743 = vmatpush.msra.mxu0 %v697
    %744 = vmatpush.msra.mxu0 %v695
    %745 = vmatpush.msra.mxu0 %v693
    %746 = vmatpush.msra.mxu0 %v691
    %747 = vmatpush.msra.mxu0 %v689
    %748 = vmatpush.msra.mxu0 %v687
    %749 = vmatpush.msra.mxu0 %v685
    %750 = vmatpush.msra.mxu0 %v683
    %751 = vmatpush.msra.mxu0 %v681
    %752 = vmatpush.msra.mxu0 %v679
    %753 = vmatpush.msra.mxu0 %v677
    %754 = vmatpush.msra.mxu0 %v675
    %755 = vmatmul.f32.gmra.mxu0 %v668
    %v756 = vpop.f32.mrf.mxu0
    %v757 = vadd.f32 1e-20, %v756
    %758 = vmatmul.f32.gmra.mxu0 %v672
    %v759 = vpop.f32.mrf.mxu0
    %v760 = vadd.f32 1e-20, %v759
    %761 = vdwg.mxu0
    %762 = vmatpush.msra.mxu0 %v737
    %763 = vmatpush.msra.mxu0 %v735
    %764 = vmatpush.msra.mxu0 %v733
    %765 = vmatpush.msra.mxu0 %v731
    %766 = vmatpush.msra.mxu0 %v729
    %767 = vmatpush.msra.mxu0 %v727
    %768 = vmatpush.msra.mxu0 %v725
    %769 = vmatpush.msra.mxu0 %v723
    %770 = vmatpush.msra.mxu0 %v721
    %771 = vmatpush.msra.mxu0 %v719
    %772 = vmatpush.msra.mxu0 %v717
    %773 = vmatpush.msra.mxu0 %v715
    %774 = vmatpush.msra.mxu0 %v713
    %775 = vmatpush.msra.mxu0 %v711
    %776 = vmatpush.msra.mxu0 %v709
    %777 = vmatpush.msra.mxu0 %v707
    %778 = vmatmul.f32.gmra.mxu0 %v670
    %v779 = vpop.f32.mrf.mxu0
    %v780 = vadd.f32 %v757, %v779
    %781 = vmatmul.f32.gmra.mxu0 %v674
    %v782 = vpop.f32.mrf.mxu0
    %v783 = vadd.f32 %v760, %v782
    %784 = vdwg.mxu0
    %785 = vmatpush.msra.mxu0 %v706
    %786 = vmatpush.msra.mxu0 %v704
    %787 = vmatpush.msra.mxu0 %v702
    %788 = vmatpush.msra.mxu0 %v700
    %789 = vmatpush.msra.mxu0 %v698
    %790 = vmatpush.msra.mxu0 %v696
    %791 = vmatpush.msra.mxu0 %v694
    %792 = vmatpush.msra.mxu0 %v692
    %793 = vmatpush.msra.mxu0 %v690
    %794 = vmatpush.msra.mxu0 %v688
    %795 = vmatpush.msra.mxu0 %v686
    %796 = vmatpush.msra.mxu0 %v684
    %797 = vmatpush.msra.mxu0 %v682
    %798 = vmatpush.msra.mxu0 %v680
    %799 = vmatpush.msra.mxu0 %v678
    %800 = vmatpush.msra.mxu0 %v676
    %801 = vmatmul.f32.gmra.mxu0 %v668
    %v802 = vpop.f32.mrf.mxu0
    %v803 = vadd.f32 1e-20, %v802
    %804 = vmatmul.f32.gmra.mxu0 %v672
    %v805 = vpop.f32.mrf.mxu0
    %v806 = vadd.f32 1e-20, %v805
    %807 = vdwg.mxu0
    %808 = vmatpush.msra.mxu0 %v738
    %809 = vmatpush.msra.mxu0 %v736
    %810 = vmatpush.msra.mxu0 %v734
    %811 = vmatpush.msra.mxu0 %v732
    %812 = vmatpush.msra.mxu0 %v730
    %813 = vmatpush.msra.mxu0 %v728
    %814 = vmatpush.msra.mxu0 %v726
    %815 = vmatpush.msra.mxu0 %v724
    %816 = vmatpush.msra.mxu0 %v722
    %817 = vmatpush.msra.mxu0 %v720
    %818 = vmatpush.msra.mxu0 %v718
    %819 = vmatpush.msra.mxu0 %v716
    %820 = vmatpush.msra.mxu0 %v714
    %821 = vmatpush.msra.mxu0 %v712
    %822 = vmatpush.msra.mxu0 %v710
    %823 = vmatpush.msra.mxu0 %v708
    %824 = vmatmul.f32.gmra.mxu0 %v670
    %v825 = vpop.f32.mrf.mxu0
    %v826 = vadd.f32 %v803, %v825
    %827 = vmatmul.f32.gmra.mxu0 %v674
    %v828 = vpop.f32.mrf.mxu0
    %v829 = vadd.f32 %v806, %v828
    %830 = vdwg.mxu0
    %v831 = vrcp.pop %v780
    %v832 = vrcp.pop %v826
    %v833 = vrcp.pop %v783
    %v834 = vrcp.pop %v829
    %v835 = vmul.f32 %v668, %v831
    %v836 = vmul.f32 %v670, %v832
    %v837 = vmul.f32 %v672, %v833
    %v838 = vmul.f32 %v674, %v834
    %v839 = vmul.f32 %v533, %v535
    %v840 = vmul.f32 %v534, %v536
    %v841 = vmul.f32 %v533, %v537
    %v842 = vmul.f32 %v534, %v538
    %v843 = vmul.f32 %v533, %v539
    %v844 = vmul.f32 %v534, %v540
    %v845 = vmul.f32 %v533, %v541
    %v846 = vmul.f32 %v534, %v542
    %v847 = vmul.f32 %v533, %v543
    %v848 = vmul.f32 %v534, %v544
    %v849 = vmul.f32 %v533, %v545
    %v850 = vmul.f32 %v534, %v546
    %v851 = vmul.f32 %v533, %v547
    %v852 = vmul.f32 %v534, %v548
    %v853 = vmul.f32 %v533, %v549
    %v854 = vmul.f32 %v534, %v550
    %v855 = vmul.f32 %v533, %v551
    %v856 = vmul.f32 %v534, %v552
    %v857 = vmul.f32 %v533, %v553
    %v858 = vmul.f32 %v534, %v554
    %v859 = vmul.f32 %v533, %v555
    %v860 = vmul.f32 %v534, %v556
    %v861 = vmul.f32 %v533, %v557
    %v862 = vmul.f32 %v534, %v558
    %v863 = vmul.f32 %v533, %v559
    %v864 = vmul.f32 %v534, %v560
    %v865 = vmul.f32 %v533, %v561
    %v866 = vmul.f32 %v534, %v562
    %v867 = vmul.f32 %v533, %v563
    %v868 = vmul.f32 %v534, %v564
    %v869 = vmul.f32 %v533, %v565
    %v870 = vmul.f32 %v534, %v566
    %871 = vmatpush.msra.mxu0 %v854
    %872 = vmatpush.msra.mxu0 %v853
    %873 = vmatpush.msra.mxu0 %v852
    %874 = vmatpush.msra.mxu0 %v851
    %875 = vmatpush.msra.mxu0 %v850
    %876 = vmatpush.msra.mxu0 %v849
    %877 = vmatpush.msra.mxu0 %v848
    %878 = vmatpush.msra.mxu0 %v847
    %879 = vmatpush.msra.mxu0 %v846
    %880 = vmatpush.msra.mxu0 %v845
    %881 = vmatpush.msra.mxu0 %v844
    %882 = vmatpush.msra.mxu0 %v843
    %883 = vmatpush.msra.mxu0 %v842
    %884 = vmatpush.msra.mxu0 %v841
    %885 = vmatpush.msra.mxu0 %v840
    %886 = vmatpush.msra.mxu0 %v839
    %887 = vmatmul.f32.gmra.mxu0 %v835
    %v888 = vpop.f32.mrf.mxu0
    %v889 = vadd.f32 0.0, %v888
    %890 = vmatmul.f32.gmra.mxu0 %v837
    %v891 = vpop.f32.mrf.mxu0
    %v892 = vadd.f32 0.0, %v891
    %893 = vdwg.mxu0
    %894 = vmatpush.msra.mxu0 %v870
    %895 = vmatpush.msra.mxu0 %v869
    %896 = vmatpush.msra.mxu0 %v868
    %897 = vmatpush.msra.mxu0 %v867
    %898 = vmatpush.msra.mxu0 %v866
    %899 = vmatpush.msra.mxu0 %v865
    %900 = vmatpush.msra.mxu0 %v864
    %901 = vmatpush.msra.mxu0 %v863
    %902 = vmatpush.msra.mxu0 %v862
    %903 = vmatpush.msra.mxu0 %v861
    %904 = vmatpush.msra.mxu0 %v860
    %905 = vmatpush.msra.mxu0 %v859
    %906 = vmatpush.msra.mxu0 %v858
    %907 = vmatpush.msra.mxu0 %v857
    %908 = vmatpush.msra.mxu0 %v856
    %909 = vmatpush.msra.mxu0 %v855
    %910 = vmatmul.f32.gmra.mxu0 %v836
    %v911 = vpop.f32.mrf.mxu0
    %v912 = vadd.f32 %v889, %v911
    %913 = vmatmul.f32.gmra.mxu0 %v838
    %v914 = vpop.f32.mrf.mxu0
    %v915 = vadd.f32 %v892, %v914
    %916 = vdwg.mxu0
    %v917 = vpack.c.bf16 %v915, %v912
    %v918 = vld [vmem:[#allocation7] sm:$0xf]
    %v919 = vld [vmem:[#allocation7 + $0x4] sm:$0xf]
    %v920 = vld [vmem:[#allocation7 + $0x8] sm:$0xf]
    %v921 = vld [vmem:[#allocation7 + $0xc] sm:$0xf]
    %v922 = vld [vmem:[#allocation7 + $0x10] sm:$0xf]
    %v923 = vld [vmem:[#allocation7 + $0x14] sm:$0xf]
    %v924 = vld [vmem:[#allocation7 + $0x18] sm:$0xf]
    %v925 = vld [vmem:[#allocation7 + $0x1c] sm:$0xf]
    %v926 = vld [vmem:[#allocation7 + $0x20] sm:$0xf]
    %v927 = vld [vmem:[#allocation7 + $0x24] sm:$0xf]
    %v928 = vld [vmem:[#allocation7 + $0x28] sm:$0xf]
    %v929 = vld [vmem:[#allocation7 + $0x2c] sm:$0xf]
    %v930 = vld [vmem:[#allocation7 + $0x30] sm:$0xf]
    %v931 = vld [vmem:[#allocation7 + $0x34] sm:$0xf]
    %v932 = vld [vmem:[#allocation7 + $0x38] sm:$0xf]
    %v933 = vld [vmem:[#allocation7 + $0x3c] sm:$0xf]
    %s934 = scalar_lea.vmem [#allocation8], 4
    %v935 = vld [vmem:[%s934] sm:$0x1]
    %v937 = vperm.slane %v935, 0
    %v955 = vunpack.c.l.b16 %v918
    %v956 = vunpack.c.l.b16 %v919
    %v957 = vunpack.c.l.b16 %v920
    %v958 = vunpack.c.l.b16 %v921
    %v959 = vunpack.c.l.b16 %v922
    %v960 = vunpack.c.l.b16 %v923
    %v961 = vunpack.c.l.b16 %v924
    %v962 = vunpack.c.l.b16 %v925
    %v963 = vunpack.c.l.b16 %v926
    %v964 = vunpack.c.l.b16 %v927
    %v965 = vunpack.c.l.b16 %v928
    %v966 = vunpack.c.l.b16 %v929
    %v967 = vunpack.c.l.b16 %v930
    %v968 = vunpack.c.l.b16 %v931
    %v969 = vunpack.c.l.b16 %v932
    %v970 = vunpack.c.l.b16 %v933
    %v971 = vpack.c.b16 %v956, %v955
    %v972 = vpack.c.b16 %v958, %v957
    %v973 = vpack.c.b16 %v960, %v959
    %v974 = vpack.c.b16 %v962, %v961
    %v975 = vpack.c.b16 %v964, %v963
    %v976 = vpack.c.b16 %v966, %v965
    %v977 = vpack.c.b16 %v968, %v967
    %v978 = vpack.c.b16 %v970, %v969
    %987 = vmatpush.bf16.msra.mxu0 %v978
    %988 = vmatpush.bf16.msra.mxu0 %v977
    %989 = vmatpush.bf16.msra.mxu0 %v976
    %990 = vmatpush.bf16.msra.mxu0 %v975
    %991 = vmatpush.bf16.msra.mxu0 %v974
    %992 = vmatpush.bf16.msra.mxu0 %v973
    %993 = vmatpush.bf16.msra.mxu0 %v972
    %994 = vmatpush.bf16.msra.mxu0 %v971
    %995 = vmatmul.bf16.gmra.mxu0 %v917
    %v996 = vpop.f32.mrf.mxu0
    %v997 = vadd.f32 %v937, %v996
    %v998 = vpop.f32.mrf.mxu0
    %v999 = vadd.f32 %v937, %v998
    %1000 = vdwg.mxu0
    %v1001 = vadd.f32 %v307, %v997
    %v1002 = vadd.f32 %v309, %v999
    %s1003 = scalar_lea.vmem [#allocation8], 7
    %v1004 = vld [vmem:[%s1003] sm:$0x1]
    %s1005 = scalar_lea.vmem [#allocation8], 8
    %v1006 = vld [vmem:[%s1005] sm:$0x1]
    %v1007 = vmul.f32 %v1001, %v1001
    %v1008 = vmul.f32 %v1002, %v1002
    %v1009 = vld [vmem:[#allocation11] sm:$0xff]
    %v1010 = vld [vmem:[#allocation11 + $0x8] sm:$0xff]
    %v1011 = vld [vmem:[#allocation11 + $0x10] sm:$0xff]
    %v1012 = vld [vmem:[#allocation11 + $0x18] sm:$0xff]
    %v1013 = vld [vmem:[#allocation11 + $0x20] sm:$0xff]
    %v1014 = vld [vmem:[#allocation11 + $0x28] sm:$0xff]
    %v1015 = vld [vmem:[#allocation11 + $0x30] sm:$0xff]
    %v1016 = vld [vmem:[#allocation11 + $0x38] sm:$0xff]
    %v1017 = vld [vmem:[#allocation11 + $0x40] sm:$0xff]
    %v1018 = vld [vmem:[#allocation11 + $0x48] sm:$0xff]
    %v1019 = vld [vmem:[#allocation11 + $0x50] sm:$0xff]
    %v1020 = vld [vmem:[#allocation11 + $0x58] sm:$0xff]
    %v1021 = vld [vmem:[#allocation11 + $0x60] sm:$0xff]
    %v1022 = vld [vmem:[#allocation11 + $0x68] sm:$0xff]
    %v1023 = vld [vmem:[#allocation11 + $0x70] sm:$0xff]
    %v1024 = vld [vmem:[#allocation11 + $0x78] sm:$0xff]
    %1025 = vmatpush.msra.mxu0 %v1024
    %1026 = vmatpush.msra.mxu0 %v1023
    %1027 = vmatpush.msra.mxu0 %v1022
    %1028 = vmatpush.msra.mxu0 %v1021
    %1029 = vmatpush.msra.mxu0 %v1020
    %1030 = vmatpush.msra.mxu0 %v1019
    %1031 = vmatpush.msra.mxu0 %v1018
    %1032 = vmatpush.msra.mxu0 %v1017
    %1033 = vmatpush.msra.mxu0 %v1016
    %1034 = vmatpush.msra.mxu0 %v1015
    %1035 = vmatpush.msra.mxu0 %v1014
    %1036 = vmatpush.msra.mxu0 %v1013
    %1037 = vmatpush.msra.mxu0 %v1012
    %1038 = vmatpush.msra.mxu0 %v1011
    %1039 = vmatpush.msra.mxu0 %v1010
    %1040 = vmatpush.msra.mxu0 %v1009
    %1041 = vmatmul.f32.gmra.mxu0 %v1001
    %v1042 = vpop.f32.mrf.mxu0
    %v1043 = vadd.f32 0.0, %v1042
    %1044 = vmatmul.f32.gmra.mxu0 %v1002
    %v1045 = vpop.f32.mrf.mxu0
    %v1046 = vadd.f32 0.0, %v1045
    %1047 = vmatmul.f32.gmra.mxu0 %v1007
    %v1048 = vpop.f32.mrf.mxu0
    %v1049 = vadd.f32 0.0, %v1048
    %1050 = vmatmul.f32.gmra.mxu0 %v1008
    %v1051 = vpop.f32.mrf.mxu0
    %v1052 = vadd.f32 0.0, %v1051
    %1053 = vdwg.mxu0
    %v1054 = vmul.f32 %v1043, %v1043
    %v1055 = vmul.f32 %v1046, %v1046
    %v1056 = vsub.f32 %v1049, %v1054
    %v1057 = vsub.f32 %v1052, %v1055
    %v1058 = vsub.f32 %v1001, %v1043
    %v1059 = vsub.f32 %v1002, %v1046
    %v1060 = vadd.f32 %v1056, 1e-05
    %v1061 = vadd.f32 %v1057, 1e-05
    %v1062 = vrsqrt.pop %v1060
    %v1063 = vmul.f32 %v1062, %v1060
    %v1064 = vmul.f32 %v1063, %v1062
    %v1065 = vmul.f32 0.5, %v1064
    %v1066 = vsub.f32 1.5, %v1065
    %v1067 = vmul.f32 %v1062, %v1066
    %vm1068 = vweird.f32 %v1060
    %vm1069 = vweird.f32 %v1062
    %vm1070 = vmor %vm1068, %vm1069
    %v1071 = vsel %vm1070, %v1062, %v1067
    %v1072 = vrsqrt.pop %v1061
    %v1073 = vmul.f32 %v1072, %v1061
    %v1074 = vmul.f32 %v1073, %v1072
    %v1075 = vmul.f32 0.5, %v1074
    %v1076 = vsub.f32 1.5, %v1075
    %v1077 = vmul.f32 %v1072, %v1076
    %vm1078 = vweird.f32 %v1061
    %vm1079 = vweird.f32 %v1072
    %vm1080 = vmor %vm1078, %vm1079
    %v1081 = vsel %vm1080, %v1072, %v1077
    %v1082 = vmul.f32 %v1058, %v1071
    %v1083 = vmul.f32 %v1059, %v1081
    %v1085 = vperm.slane %v1004, 0
    %v1087 = vmul.f32 %v1082, %v1085
    %v1088 = vmul.f32 %v1083, %v1085
    %v1090 = vperm.slane %v1006, 0
    %v1092 = vadd.f32 %v1087, %v1090
    %v1093 = vadd.f32 %v1088, %v1090
    %v1094 = vpack.c.bf16 %v1093, %v1092
    %s1095 = scalar_lea.vmem [#allocation7], 64
    %v1096 = vld [vmem:[%s1095] sm:$0xf]
    %v1097 = vld [vmem:[%s1095 + $0x4] sm:$0xf]
    %v1098 = vld [vmem:[%s1095 + $0x8] sm:$0xf]
    %v1099 = vld [vmem:[%s1095 + $0xc] sm:$0xf]
    %v1100 = vld [vmem:[%s1095 + $0x10] sm:$0xf]
    %v1101 = vld [vmem:[%s1095 + $0x14] sm:$0xf]
    %v1102 = vld [vmem:[%s1095 + $0x18] sm:$0xf]
    %v1103 = vld [vmem:[%s1095 + $0x1c] sm:$0xf]
    %v1104 = vld [vmem:[%s1095 + $0x20] sm:$0xf]
    %v1105 = vld [vmem:[%s1095 + $0x24] sm:$0xf]
    %v1106 = vld [vmem:[%s1095 + $0x28] sm:$0xf]
    %v1107 = vld [vmem:[%s1095 + $0x2c] sm:$0xf]
    %v1108 = vld [vmem:[%s1095 + $0x30] sm:$0xf]
    %v1109 = vld [vmem:[%s1095 + $0x34] sm:$0xf]
    %v1110 = vld [vmem:[%s1095 + $0x38] sm:$0xf]
    %v1111 = vld [vmem:[%s1095 + $0x3c] sm:$0xf]
    %s1112 = scalar_lea.vmem [#allocation8], 5
    %v1113 = vld [vmem:[%s1112] sm:$0x1]
    %v1115 = vperm.slane %v1113, 0
    %v1133 = vunpack.c.l.b16 %v1096
    %v1134 = vunpack.c.l.b16 %v1097
    %v1135 = vunpack.c.l.b16 %v1098
    %v1136 = vunpack.c.l.b16 %v1099
    %v1137 = vunpack.c.l.b16 %v1100
    %v1138 = vunpack.c.l.b16 %v1101
    %v1139 = vunpack.c.l.b16 %v1102
    %v1140 = vunpack.c.l.b16 %v1103
    %v1141 = vunpack.c.l.b16 %v1104
    %v1142 = vunpack.c.l.b16 %v1105
    %v1143 = vunpack.c.l.b16 %v1106
    %v1144 = vunpack.c.l.b16 %v1107
    %v1145 = vunpack.c.l.b16 %v1108
    %v1146 = vunpack.c.l.b16 %v1109
    %v1147 = vunpack.c.l.b16 %v1110
    %v1148 = vunpack.c.l.b16 %v1111
    %v1149 = vpack.c.b16 %v1134, %v1133
    %v1150 = vpack.c.b16 %v1136, %v1135
    %v1151 = vpack.c.b16 %v1138, %v1137
    %v1152 = vpack.c.b16 %v1140, %v1139
    %v1153 = vpack.c.b16 %v1142, %v1141
    %v1154 = vpack.c.b16 %v1144, %v1143
    %v1155 = vpack.c.b16 %v1146, %v1145
    %v1156 = vpack.c.b16 %v1148, %v1147
    %1165 = vmatpush.bf16.msra.mxu0 %v1156
    %1166 = vmatpush.bf16.msra.mxu0 %v1155
    %1167 = vmatpush.bf16.msra.mxu0 %v1154
    %1168 = vmatpush.bf16.msra.mxu0 %v1153
    %1169 = vmatpush.bf16.msra.mxu0 %v1152
    %1170 = vmatpush.bf16.msra.mxu0 %v1151
    %1171 = vmatpush.bf16.msra.mxu0 %v1150
    %1172 = vmatpush.bf16.msra.mxu0 %v1149
    %1173 = vmatmul.bf16.gmra.mxu0 %v1094
    %v1174 = vpop.f32.mrf.mxu0
    %v1175 = vadd.f32 %v1115, %v1174
    %v1176 = vpop.f32.mrf.mxu0
    %v1177 = vadd.f32 %v1115, %v1176
    %1178 = vdwg.mxu0
    %v1179 = vmul.f32 %v1175, %v1175
    %v1180 = vmul.f32 %v1177, %v1177
    %v1181 = vmul.f32 %v1175, %v1179
    %v1182 = vmul.f32 %v1177, %v1180
    %v1183 = vmul.f32 %v1181, 0.044715
    %v1184 = vmul.f32 %v1182, 0.044715
    %v1185 = vadd.f32 %v1175, %v1183
    %v1186 = vadd.f32 %v1177, %v1184
    %v1187 = vmul.f32 %v1185, 0.7978846
    %v1188 = vmul.f32 %v1186, 0.7978846
    %v1189 = vtanh.pop %v1187
    %v1190 = vtanh.pop %v1188
    %v1191 = vadd.f32 %v1189, 1.0
    %v1192 = vadd.f32 %v1190, 1.0
    %v1193 = vmul.f32 %v1191, 0.5
    %v1194 = vmul.f32 %v1192, 0.5
    %v1195 = vmul.f32 %v1175, %v1193
    %v1196 = vmul.f32 %v1177, %v1194
    %v1197 = vpack.c.bf16 %v1196, %v1195
    %s1198 = scalar_lea.vmem [#allocation7], 128
    %v1199 = vld [vmem:[%s1198] sm:$0xf]
    %v1200 = vld [vmem:[%s1198 + $0x4] sm:$0xf]
    %v1201 = vld [vmem:[%s1198 + $0x8] sm:$0xf]
    %v1202 = vld [vmem:[%s1198 + $0xc] sm:$0xf]
    %v1203 = vld [vmem:[%s1198 + $0x10] sm:$0xf]
    %v1204 = vld [vmem:[%s1198 + $0x14] sm:$0xf]
    %v1205 = vld [vmem:[%s1198 + $0x18] sm:$0xf]
    %v1206 = vld [vmem:[%s1198 + $0x1c] sm:$0xf]
    %v1207 = vld [vmem:[%s1198 + $0x20] sm:$0xf]
    %v1208 = vld [vmem:[%s1198 + $0x24] sm:$0xf]
    %v1209 = vld [vmem:[%s1198 + $0x28] sm:$0xf]
    %v1210 = vld [vmem:[%s1198 + $0x2c] sm:$0xf]
    %v1211 = vld [vmem:[%s1198 + $0x30] sm:$0xf]
    %v1212 = vld [vmem:[%s1198 + $0x34] sm:$0xf]
    %v1213 = vld [vmem:[%s1198 + $0x38] sm:$0xf]
    %v1214 = vld [vmem:[%s1198 + $0x3c] sm:$0xf]
    %s1215 = scalar_lea.vmem [#allocation8], 6
    %v1216 = vld [vmem:[%s1215] sm:$0x1]
    %v1218 = vperm.slane %v1216, 0
    %v1236 = vunpack.c.l.b16 %v1199
    %v1237 = vunpack.c.l.b16 %v1200
    %v1238 = vunpack.c.l.b16 %v1201
    %v1239 = vunpack.c.l.b16 %v1202
    %v1240 = vunpack.c.l.b16 %v1203
    %v1241 = vunpack.c.l.b16 %v1204
    %v1242 = vunpack.c.l.b16 %v1205
    %v1243 = vunpack.c.l.b16 %v1206
    %v1244 = vunpack.c.l.b16 %v1207
    %v1245 = vunpack.c.l.b16 %v1208
    %v1246 = vunpack.c.l.b16 %v1209
    %v1247 = vunpack.c.l.b16 %v1210
    %v1248 = vunpack.c.l.b16 %v1211
    %v1249 = vunpack.c.l.b16 %v1212
    %v1250 = vunpack.c.l.b16 %v1213
    %v1251 = vunpack.c.l.b16 %v1214
    %v1252 = vpack.c.b16 %v1237, %v1236
    %v1253 = vpack.c.b16 %v1239, %v1238
    %v1254 = vpack.c.b16 %v1241, %v1240
    %v1255 = vpack.c.b16 %v1243, %v1242
    %v1256 = vpack.c.b16 %v1245, %v1244
    %v1257 = vpack.c.b16 %v1247, %v1246
    %v1258 = vpack.c.b16 %v1249, %v1248
    %v1259 = vpack.c.b16 %v1251, %v1250
    %1268 = vmatpush.bf16.msra.mxu0 %v1259
    %1269 = vmatpush.bf16.msra.mxu0 %v1258
    %1270 = vmatpush.bf16.msra.mxu0 %v1257
    %1271 = vmatpush.bf16.msra.mxu0 %v1256
    %1272 = vmatpush.bf16.msra.mxu0 %v1255
    %1273 = vmatpush.bf16.msra.mxu0 %v1254
    %1274 = vmatpush.bf16.msra.mxu0 %v1253
    %1275 = vmatpush.bf16.msra.mxu0 %v1252
    %1276 = vmatmul.bf16.gmra.mxu0 %v1197
    %v1277 = vpop.f32.mrf.mxu0
    %v1278 = vadd.f32 %v1218, %v1277
    %v1279 = vpop.f32.mrf.mxu0
    %v1280 = vadd.f32 %v1218, %v1279
    %1281 = vdwg.mxu0
    %v1282 = vadd.f32 %v1092, %v1278
    %v1283 = vadd.f32 %v1093, %v1280
    %s1284 = scalar_lea.vmem [#allocation8], 9
    %v1285 = vld [vmem:[%s1284] sm:$0x1]
    %s1286 = scalar_lea.vmem [#allocation8], 10
    %v1287 = vld [vmem:[%s1286] sm:$0x1]
    %v1288 = vmul.f32 %v1282, %v1282
    %v1289 = vmul.f32 %v1283, %v1283
    %1290 = vmatpush.msra.mxu0 %v1024
    %1291 = vmatpush.msra.mxu0 %v1023
    %1292 = vmatpush.msra.mxu0 %v1022
    %1293 = vmatpush.msra.mxu0 %v1021
    %1294 = vmatpush.msra.mxu0 %v1020
    %1295 = vmatpush.msra.mxu0 %v1019
    %1296 = vmatpush.msra.mxu0 %v1018
    %1297 = vmatpush.msra.mxu0 %v1017
    %1298 = vmatpush.msra.mxu0 %v1016
    %1299 = vmatpush.msra.mxu0 %v1015
    %1300 = vmatpush.msra.mxu0 %v1014
    %1301 = vmatpush.msra.mxu0 %v1013
    %1302 = vmatpush.msra.mxu0 %v1012
    %1303 = vmatpush.msra.mxu0 %v1011
    %1304 = vmatpush.msra.mxu0 %v1010
    %1305 = vmatpush.msra.mxu0 %v1009
    %1306 = vmatmul.f32.gmra.mxu0 %v1282
    %v1307 = vpop.f32.mrf.mxu0
    %v1308 = vadd.f32 0.0, %v1307
    %1309 = vmatmul.f32.gmra.mxu0 %v1283
    %v1310 = vpop.f32.mrf.mxu0
    %v1311 = vadd.f32 0.0, %v1310
    %1312 = vmatmul.f32.gmra.mxu0 %v1288
    %v1313 = vpop.f32.mrf.mxu0
    %v1314 = vadd.f32 0.0, %v1313
    %1315 = vmatmul.f32.gmra.mxu0 %v1289
    %v1316 = vpop.f32.mrf.mxu0
    %v1317 = vadd.f32 0.0, %v1316
    %1318 = vdwg.mxu0
    %v1319 = vmul.f32 %v1308, %v1308
    %v1320 = vmul.f32 %v1311, %v1311
    %v1321 = vsub.f32 %v1314, %v1319
    %v1322 = vsub.f32 %v1317, %v1320
    %v1323 = vsub.f32 %v1282, %v1308
    %v1324 = vsub.f32 %v1283, %v1311
    %v1325 = vadd.f32 %v1321, 1e-05
    %v1326 = vadd.f32 %v1322, 1e-05
    %v1327 = vrsqrt.pop %v1325
    %v1328 = vmul.f32 %v1327, %v1325
    %v1329 = vmul.f32 %v1328, %v1327
    %v1330 = vmul.f32 0.5, %v1329
    %v1331 = vsub.f32 1.5, %v1330
    %v1332 = vmul.f32 %v1327, %v1331
    %vm1333 = vweird.f32 %v1325
    %vm1334 = vweird.f32 %v1327
    %vm1335 = vmor %vm1333, %vm1334
    %v1336 = vsel %vm1335, %v1327, %v1332
    %v1337 = vrsqrt.pop %v1326
    %v1338 = vmul.f32 %v1337, %v1326
    %v1339 = vmul.f32 %v1338, %v1337
    %v1340 = vmul.f32 0.5, %v1339
    %v1341 = vsub.f32 1.5, %v1340
    %v1342 = vmul.f32 %v1337, %v1341
    %vm1343 = vweird.f32 %v1326
    %vm1344 = vweird.f32 %v1337
    %vm1345 = vmor %vm1343, %vm1344
    %v1346 = vsel %vm1345, %v1337, %v1342
    %v1347 = vmul.f32 %v1323, %v1336
    %v1348 = vmul.f32 %v1324, %v1346
    %v1350 = vperm.slane %v1285, 0
    %v1352 = vmul.f32 %v1347, %v1350
    %v1353 = vmul.f32 %v1348, %v1350
    %v1355 = vperm.slane %v1287, 0
    %v1357 = vadd.f32 %v1352, %v1355
    %v1358 = vadd.f32 %v1353, %v1355
    %v1359 = vpack.c.bf16 %v1358, %v1357
    %s1360 = scalar_lea.vmem [#allocation5], 192
    %v1361 = vld [vmem:[%s1360] sm:$0xff]
    %v1362 = vld [vmem:[%s1360 + $0x8] sm:$0xf]
    %v1363 = vld [vmem:[%s1360 + $0xc] sm:$0xff]
    %v1364 = vld [vmem:[%s1360 + $0x14] sm:$0xf]
    %v1365 = vld [vmem:[%s1360 + $0x18] sm:$0xff]
    %v1366 = vld [vmem:[%s1360 + $0x20] sm:$0xf]
    %v1367 = vld [vmem:[%s1360 + $0x24] sm:$0xff]
    %v1368 = vld [vmem:[%s1360 + $0x2c] sm:$0xf]
    %v1369 = vld [vmem:[%s1360 + $0x30] sm:$0xff]
    %v1370 = vld [vmem:[%s1360 + $0x38] sm:$0xf]
    %v1371 = vld [vmem:[%s1360 + $0x3c] sm:$0xff]
    %v1372 = vld [vmem:[%s1360 + $0x44] sm:$0xf]
    %v1373 = vld [vmem:[%s1360 + $0x48] sm:$0xff]
    %v1374 = vld [vmem:[%s1360 + $0x50] sm:$0xf]
    %v1375 = vld [vmem:[%s1360 + $0x54] sm:$0xff]
    %v1376 = vld [vmem:[%s1360 + $0x5c] sm:$0xf]
    %v1377 = vld [vmem:[%s1360 + $0x60] sm:$0xff]
    %v1378 = vld [vmem:[%s1360 + $0x68] sm:$0xf]
    %v1379 = vld [vmem:[%s1360 + $0x6c] sm:$0xff]
    %v1380 = vld [vmem:[%s1360 + $0x74] sm:$0xf]
    %v1381 = vld [vmem:[%s1360 + $0x78] sm:$0xff]
    %v1382 = vld [vmem:[%s1360 + $0x80] sm:$0xf]
    %v1383 = vld [vmem:[%s1360 + $0x84] sm:$0xff]
    %v1384 = vld [vmem:[%s1360 + $0x8c] sm:$0xf]
    %v1385 = vld [vmem:[%s1360 + $0x90] sm:$0xff]
    %v1386 = vld [vmem:[%s1360 + $0x98] sm:$0xf]
    %v1387 = vld [vmem:[%s1360 + $0x9c] sm:$0xff]
    %v1388 = vld [vmem:[%s1360 + $0xa4] sm:$0xf]
    %v1389 = vld [vmem:[%s1360 + $0xa8] sm:$0xff]
    %v1390 = vld [vmem:[%s1360 + $0xb0] sm:$0xf]
    %v1391 = vld [vmem:[%s1360 + $0xb4] sm:$0xff]
    %v1392 = vld [vmem:[%s1360 + $0xbc] sm:$0xf]
    %v1425 = vunpack.c.l.b16 %v1361
    %v1426 = vunpack.c.h.b16 %v1361
    %v1427 = vunpack.c.l.b16 %v1362
    %v1428 = vunpack.c.l.b16 %v1363
    %v1429 = vunpack.c.h.b16 %v1363
    %v1430 = vunpack.c.l.b16 %v1364
    %v1431 = vunpack.c.l.b16 %v1365
    %v1432 = vunpack.c.h.b16 %v1365
    %v1433 = vunpack.c.l.b16 %v1366
    %v1434 = vunpack.c.l.b16 %v1367
    %v1435 = vunpack.c.h.b16 %v1367
    %v1436 = vunpack.c.l.b16 %v1368
    %v1437 = vunpack.c.l.b16 %v1369
    %v1438 = vunpack.c.h.b16 %v1369
    %v1439 = vunpack.c.l.b16 %v1370
    %v1440 = vunpack.c.l.b16 %v1371
    %v1441 = vunpack.c.h.b16 %v1371
    %v1442 = vunpack.c.l.b16 %v1372
    %v1443 = vunpack.c.l.b16 %v1373
    %v1444 = vunpack.c.h.b16 %v1373
    %v1445 = vunpack.c.l.b16 %v1374
    %v1446 = vunpack.c.l.b16 %v1375
    %v1447 = vunpack.c.h.b16 %v1375
    %v1448 = vunpack.c.l.b16 %v1376
    %v1449 = vunpack.c.l.b16 %v1377
    %v1450 = vunpack.c.h.b16 %v1377
    %v1451 = vunpack.c.l.b16 %v1378
    %v1452 = vunpack.c.l.b16 %v1379
    %v1453 = vunpack.c.h.b16 %v1379
    %v1454 = vunpack.c.l.b16 %v1380
    %v1455 = vunpack.c.l.b16 %v1381
    %v1456 = vunpack.c.h.b16 %v1381
    %v1457 = vunpack.c.l.b16 %v1382
    %v1458 = vunpack.c.l.b16 %v1383
    %v1459 = vunpack.c.h.b16 %v1383
    %v1460 = vunpack.c.l.b16 %v1384
    %v1461 = vunpack.c.l.b16 %v1385
    %v1462 = vunpack.c.h.b16 %v1385
    %v1463 = vunpack.c.l.b16 %v1386
    %v1464 = vunpack.c.l.b16 %v1387
    %v1465 = vunpack.c.h.b16 %v1387
    %v1466 = vunpack.c.l.b16 %v1388
    %v1467 = vunpack.c.l.b16 %v1389
    %v1468 = vunpack.c.h.b16 %v1389
    %v1469 = vunpack.c.l.b16 %v1390
    %v1470 = vunpack.c.l.b16 %v1391
    %v1471 = vunpack.c.h.b16 %v1391
    %v1472 = vunpack.c.l.b16 %v1392
    %v1473 = vpack.c.b16 %v1428, %v1425
    %v1474 = vpack.c.b16 %v1429, %v1426
    %v1475 = vpack.c.b16 %v1430, %v1427
    %v1476 = vpack.c.b16 %v1434, %v1431
    %v1477 = vpack.c.b16 %v1435, %v1432
    %v1478 = vpack.c.b16 %v1436, %v1433
    %v1479 = vpack.c.b16 %v1440, %v1437
    %v1480 = vpack.c.b16 %v1441, %v1438
    %v1481 = vpack.c.b16 %v1442, %v1439
    %v1482 = vpack.c.b16 %v1446, %v1443
    %v1483 = vpack.c.b16 %v1447, %v1444
    %v1484 = vpack.c.b16 %v1448, %v1445
    %v1485 = vpack.c.b16 %v1452, %v1449
    %v1486 = vpack.c.b16 %v1453, %v1450
    %v1487 = vpack.c.b16 %v1454, %v1451
    %v1488 = vpack.c.b16 %v1458, %v1455
    %v1489 = vpack.c.b16 %v1459, %v1456
    %v1490 = vpack.c.b16 %v1460, %v1457
    %v1491 = vpack.c.b16 %v1464, %v1461
    %v1492 = vpack.c.b16 %v1465, %v1462
    %v1493 = vpack.c.b16 %v1466, %v1463
    %v1494 = vpack.c.b16 %v1470, %v1467
    %v1495 = vpack.c.b16 %v1471, %v1468
    %v1496 = vpack.c.b16 %v1472, %v1469
    %1521 = vmatpush.bf16.msra.mxu0 %v1494
    %1522 = vmatpush.bf16.msra.mxu0 %v1491
    %1523 = vmatpush.bf16.msra.mxu0 %v1488
    %1524 = vmatpush.bf16.msra.mxu0 %v1485
    %1525 = vmatpush.bf16.msra.mxu0 %v1482
    %1526 = vmatpush.bf16.msra.mxu0 %v1479
    %1527 = vmatpush.bf16.msra.mxu0 %v1476
    %1528 = vmatpush.bf16.msra.mxu0 %v1473
    %1529 = vmatmul.bf16.gmra.mxu0 %v1359
    %v1530 = vpop.f32.mrf.mxu0
    %v1531 = vadd.f32 0.0, %v1530
    %v1532 = vpop.f32.mrf.mxu0
    %v1533 = vadd.f32 0.0, %v1532
    %1534 = vdwg.mxu0
    %1535 = vmatpush.bf16.msra.mxu0 %v1495
    %1536 = vmatpush.bf16.msra.mxu0 %v1492
    %1537 = vmatpush.bf16.msra.mxu0 %v1489
    %1538 = vmatpush.bf16.msra.mxu0 %v1486
    %1539 = vmatpush.bf16.msra.mxu0 %v1483
    %1540 = vmatpush.bf16.msra.mxu0 %v1480
    %1541 = vmatpush.bf16.msra.mxu0 %v1477
    %1542 = vmatpush.bf16.msra.mxu0 %v1474
    %1543 = vmatmul.bf16.gmra.mxu0 %v1359
    %v1544 = vpop.f32.mrf.mxu0
    %v1545 = vadd.f32 0.0, %v1544
    %v1546 = vpop.f32.mrf.mxu0
    %v1547 = vadd.f32 0.0, %v1546
    %1548 = vdwg.mxu0
    %1549 = vmatpush.bf16.msra.mxu0 %v1496
    %1550 = vmatpush.bf16.msra.mxu0 %v1493
    %1551 = vmatpush.bf16.msra.mxu0 %v1490
    %1552 = vmatpush.bf16.msra.mxu0 %v1487
    %1553 = vmatpush.bf16.msra.mxu0 %v1484
    %1554 = vmatpush.bf16.msra.mxu0 %v1481
    %1555 = vmatpush.bf16.msra.mxu0 %v1478
    %1556 = vmatpush.bf16.msra.mxu0 %v1475
    %1557 = vmatmul.bf16.gmra.mxu0 %v1359
    %v1558 = vpop.f32.mrf.mxu0
    %v1559 = vadd.f32 0.0, %v1558
    %v1560 = vpop.f32.mrf.mxu0
    %v1561 = vadd.f32 0.0, %v1560
    %1562 = vdwg.mxu0
    %s1563 = scalar_lea.vmem [#allocation8], 11
    %v1564 = vld [vmem:[%s1563] sm:$0x1]
    %v1566 = vperm.slane %v1564, 0
    %v1568 = vadd.f32 %v1531, %v1566
    %v1569 = vadd.f32 %v1533, %v1566
    %s1570 = scalar_lea.vmem [#allocation8], 12
    %v1571 = vld [vmem:[%s1570] sm:$0x1]
    %v1573 = vperm.slane %v1571, 0
    %v1575 = vadd.f32 %v1545, %v1573
    %v1576 = vadd.f32 %v1547, %v1573
    %s1577 = scalar_lea.vmem [#allocation8], 13
    %v1578 = vld [vmem:[%s1577] sm:$0x1]
    %v1580 = vperm.slane %v1578, 0
    %v1582 = vadd.f32 %v1559, %v1580
    %v1583 = vadd.f32 %v1561, %v1580
    %v1584 = vmul.f32 %v1575, %v535
    %v1585 = vmul.f32 %v1576, %v536
    %v1586 = vmul.f32 %v1575, %v537
    %v1587 = vmul.f32 %v1576, %v538
    %v1588 = vmul.f32 %v1575, %v539
    %v1589 = vmul.f32 %v1576, %v540
    %v1590 = vmul.f32 %v1575, %v541
    %v1591 = vmul.f32 %v1576, %v542
    %v1592 = vmul.f32 %v1575, %v543
    %v1593 = vmul.f32 %v1576, %v544
    %v1594 = vmul.f32 %v1575, %v545
    %v1595 = vmul.f32 %v1576, %v546
    %v1596 = vmul.f32 %v1575, %v547
    %v1597 = vmul.f32 %v1576, %v548
    %v1598 = vmul.f32 %v1575, %v549
    %v1599 = vmul.f32 %v1576, %v550
    %v1600 = vmul.f32 %v1575, %v551
    %v1601 = vmul.f32 %v1576, %v552
    %v1602 = vmul.f32 %v1575, %v553
    %v1603 = vmul.f32 %v1576, %v554
    %v1604 = vmul.f32 %v1575, %v555
    %v1605 = vmul.f32 %v1576, %v556
    %v1606 = vmul.f32 %v1575, %v557
    %v1607 = vmul.f32 %v1576, %v558
    %v1608 = vmul.f32 %v1575, %v559
    %v1609 = vmul.f32 %v1576, %v560
    %v1610 = vmul.f32 %v1575, %v561
    %v1611 = vmul.f32 %v1576, %v562
    %v1612 = vmul.f32 %v1575, %v563
    %v1613 = vmul.f32 %v1576, %v564
    %v1614 = vmul.f32 %v1575, %v565
    %v1615 = vmul.f32 %v1576, %v566
    %1616 = vmatpush.xpose.msra.mxu0 %v1599
    %1617 = vmatpush.xpose.msra.mxu0 %v1598
    %1618 = vmatpush.xpose.msra.mxu0 %v1597
    %1619 = vmatpush.xpose.msra.mxu0 %v1596
    %1620 = vmatpush.xpose.msra.mxu0 %v1595
    %1621 = vmatpush.xpose.msra.mxu0 %v1594
    %1622 = vmatpush.xpose.msra.mxu0 %v1593
    %1623 = vmatpush.xpose.msra.mxu0 %v1592
    %1624 = vmatpush.xpose.msra.mxu0 %v1591
    %1625 = vmatpush.xpose.msra.mxu0 %v1590
    %1626 = vmatpush.xpose.msra.mxu0 %v1589
    %1627 = vmatpush.xpose.msra.mxu0 %v1588
    %1628 = vmatpush.xpose.msra.mxu0 %v1587
    %1629 = vmatpush.xpose.msra.mxu0 %v1586
    %1630 = vmatpush.xpose.msra.mxu0 %v1585
    %1631 = vmatpush.xpose.msra.mxu0 %v1584
    %1632 = vmatmul.f32.gmra.mxu0 %v1568
    %v1633 = vpop.f32.mrf.mxu0
    %v1634 = vadd.f32 0.0, %v1633
    %1635 = vmatmul.f32.gmra.mxu0 %v1569
    %v1636 = vpop.f32.mrf.mxu0
    %v1637 = vadd.f32 0.0, %v1636
    %1638 = vdwg.mxu0
    %1639 = vmatpush.xpose.msra.mxu0 %v1615
    %1640 = vmatpush.xpose.msra.mxu0 %v1614
    %1641 = vmatpush.xpose.msra.mxu0 %v1613
    %1642 = vmatpush.xpose.msra.mxu0 %v1612
    %1643 = vmatpush.xpose.msra.mxu0 %v1611
    %1644 = vmatpush.xpose.msra.mxu0 %v1610
    %1645 = vmatpush.xpose.msra.mxu0 %v1609
    %1646 = vmatpush.xpose.msra.mxu0 %v1608
    %1647 = vmatpush.xpose.msra.mxu0 %v1607
    %1648 = vmatpush.xpose.msra.mxu0 %v1606
    %1649 = vmatpush.xpose.msra.mxu0 %v1605
    %1650 = vmatpush.xpose.msra.mxu0 %v1604
    %1651 = vmatpush.xpose.msra.mxu0 %v1603
    %1652 = vmatpush.xpose.msra.mxu0 %v1602
    %1653 = vmatpush.xpose.msra.mxu0 %v1601
    %1654 = vmatpush.xpose.msra.mxu0 %v1600
    %1655 = vmatmul.f32.gmra.mxu0 %v1568
    %v1656 = vpop.f32.mrf.mxu0
    %v1657 = vadd.f32 0.0, %v1656
    %1658 = vmatmul.f32.gmra.mxu0 %v1569
    %v1659 = vpop.f32.mrf.mxu0
    %v1660 = vadd.f32 0.0, %v1659
    %1661 = vdwg.mxu0
    %v1662 = vmul.f32 %v1634, 0.35355338
    %v1663 = vmul.f32 %v1657, 0.35355338
    %v1664 = vmul.f32 %v1637, 0.35355338
    %v1665 = vmul.f32 %v1660, 0.35355338
    %v1666 = vadd.f32 %v1662, %v649
    %v1667 = vadd.f32 %v1663, %v650
    %v1668 = vadd.f32 %v1664, %v651
    %v1669 = vadd.f32 %v1665, %v652
    %v1670 = vmax.f32 %v1666, %v1667
    %1671 = vmax.xlane.f32.xlu0 %v1670
    %v1672 = vpop.xlane.xlu0 %1671
    %v1673 = vmax.f32 %v1668, %v1669
    %1674 = vmax.xlane.f32.xlu0 %v1673
    %v1675 = vpop.xlane.xlu0 %1674
    %v1676 = vsub.f32 %v1666, %v1672
    %v1677 = vsub.f32 %v1667, %v1672
    %v1678 = vsub.f32 %v1668, %v1675
    %v1679 = vsub.f32 %v1669, %v1675
    %v1680 = vmul.f32 %v1676, 1.442695
    %v1681 = vpow.pop %v1680
    %v1682 = vmul.f32 %v1677, 1.442695
    %v1683 = vpow.pop %v1682
    %v1684 = vmul.f32 %v1678, 1.442695
    %v1685 = vpow.pop %v1684
    %v1686 = vmul.f32 %v1679, 1.442695
    %v1687 = vpow.pop %v1686
    %1688 = vmatpush.msra.mxu0 %v705
    %1689 = vmatpush.msra.mxu0 %v703
    %1690 = vmatpush.msra.mxu0 %v701
    %1691 = vmatpush.msra.mxu0 %v699
    %1692 = vmatpush.msra.mxu0 %v697
    %1693 = vmatpush.msra.mxu0 %v695
    %1694 = vmatpush.msra.mxu0 %v693
    %1695 = vmatpush.msra.mxu0 %v691
    %1696 = vmatpush.msra.mxu0 %v689
    %1697 = vmatpush.msra.mxu0 %v687
    %1698 = vmatpush.msra.mxu0 %v685
    %1699 = vmatpush.msra.mxu0 %v683
    %1700 = vmatpush.msra.mxu0 %v681
    %1701 = vmatpush.msra.mxu0 %v679
    %1702 = vmatpush.msra.mxu0 %v677
    %1703 = vmatpush.msra.mxu0 %v675
    %1704 = vmatmul.f32.gmra.mxu0 %v1681
    %v1705 = vpop.f32.mrf.mxu0
    %v1706 = vadd.f32 1e-20, %v1705
    %1707 = vmatmul.f32.gmra.mxu0 %v1685
    %v1708 = vpop.f32.mrf.mxu0
    %v1709 = vadd.f32 1e-20, %v1708
    %1710 = vdwg.mxu0
    %1711 = vmatpush.msra.mxu0 %v737
    %1712 = vmatpush.msra.mxu0 %v735
    %1713 = vmatpush.msra.mxu0 %v733
    %1714 = vmatpush.msra.mxu0 %v731
    %1715 = vmatpush.msra.mxu0 %v729
    %1716 = vmatpush.msra.mxu0 %v727
    %1717 = vmatpush.msra.mxu0 %v725
    %1718 = vmatpush.msra.mxu0 %v723
    %1719 = vmatpush.msra.mxu0 %v721
    %1720 = vmatpush.msra.mxu0 %v719
    %1721 = vmatpush.msra.mxu0 %v717
    %1722 = vmatpush.msra.mxu0 %v715
    %1723 = vmatpush.msra.mxu0 %v713
    %1724 = vmatpush.msra.mxu0 %v711
    %1725 = vmatpush.msra.mxu0 %v709
    %1726 = vmatpush.msra.mxu0 %v707
    %1727 = vmatmul.f32.gmra.mxu0 %v1683
    %v1728 = vpop.f32.mrf.mxu0
    %v1729 = vadd.f32 %v1706, %v1728
    %1730 = vmatmul.f32.gmra.mxu0 %v1687
    %v1731 = vpop.f32.mrf.mxu0
    %v1732 = vadd.f32 %v1709, %v1731
    %1733 = vdwg.mxu0
    %1734 = vmatpush.msra.mxu0 %v706
    %1735 = vmatpush.msra.mxu0 %v704
    %1736 = vmatpush.msra.mxu0 %v702
    %1737 = vmatpush.msra.mxu0 %v700
    %1738 = vmatpush.msra.mxu0 %v698
    %1739 = vmatpush.msra.mxu0 %v696
    %1740 = vmatpush.msra.mxu0 %v694
    %1741 = vmatpush.msra.mxu0 %v692
    %1742 = vmatpush.msra.mxu0 %v690
    %1743 = vmatpush.msra.mxu0 %v688
    %1744 = vmatpush.msra.mxu0 %v686
    %1745 = vmatpush.msra.mxu0 %v684
    %1746 = vmatpush.msra.mxu0 %v682
    %1747 = vmatpush.msra.mxu0 %v680
    %1748 = vmatpush.msra.mxu0 %v678
    %1749 = vmatpush.msra.mxu0 %v676
    %1750 = vmatmul.f32.gmra.mxu0 %v1681
    %v1751 = vpop.f32.mrf.mxu0
    %v1752 = vadd.f32 1e-20, %v1751
    %1753 = vmatmul.f32.gmra.mxu0 %v1685
    %v1754 = vpop.f32.mrf.mxu0
    %v1755 = vadd.f32 1e-20, %v1754
    %1756 = vdwg.mxu0
    %1757 = vmatpush.msra.mxu0 %v738
    %1758 = vmatpush.msra.mxu0 %v736
    %1759 = vmatpush.msra.mxu0 %v734
    %1760 = vmatpush.msra.mxu0 %v732
    %1761 = vmatpush.msra.mxu0 %v730
    %1762 = vmatpush.msra.mxu0 %v728
    %1763 = vmatpush.msra.mxu0 %v726
    %1764 = vmatpush.msra.mxu0 %v724
    %1765 = vmatpush.msra.mxu0 %v722
    %1766 = vmatpush.msra.mxu0 %v720
    %1767 = vmatpush.msra.mxu0 %v718
    %1768 = vmatpush.msra.mxu0 %v716
    %1769 = vmatpush.msra.mxu0 %v714
    %1770 = vmatpush.msra.mxu0 %v712
    %1771 = vmatpush.msra.mxu0 %v710
    %1772 = vmatpush.msra.mxu0 %v708
    %1773 = vmatmul.f32.gmra.mxu0 %v1683
    %v1774 = vpop.f32.mrf.mxu0
    %v1775 = vadd.f32 %v1752, %v1774
    %1776 = vmatmul.f32.gmra.mxu0 %v1687
    %v1777 = vpop.f32.mrf.mxu0
    %v1778 = vadd.f32 %v1755, %v1777
    %1779 = vdwg.mxu0
    %v1780 = vrcp.pop %v1729
    %v1781 = vrcp.pop %v1775
    %v1782 = vrcp.pop %v1732
    %v1783 = vrcp.pop %v1778
    %v1784 = vmul.f32 %v1681, %v1780
    %v1785 = vmul.f32 %v1683, %v1781
    %v1786 = vmul.f32 %v1685, %v1782
    %v1787 = vmul.f32 %v1687, %v1783
    %v1788 = vmul.f32 %v1582, %v535
    %v1789 = vmul.f32 %v1583, %v536
    %v1790 = vmul.f32 %v1582, %v537
    %v1791 = vmul.f32 %v1583, %v538
    %v1792 = vmul.f32 %v1582, %v539
    %v1793 = vmul.f32 %v1583, %v540
    %v1794 = vmul.f32 %v1582, %v541
    %v1795 = vmul.f32 %v1583, %v542
    %v1796 = vmul.f32 %v1582, %v543
    %v1797 = vmul.f32 %v1583, %v544
    %v1798 = vmul.f32 %v1582, %v545
    %v1799 = vmul.f32 %v1583, %v546
    %v1800 = vmul.f32 %v1582, %v547
    %v1801 = vmul.f32 %v1583, %v548
    %v1802 = vmul.f32 %v1582, %v549
    %v1803 = vmul.f32 %v1583, %v550
    %v1804 = vmul.f32 %v1582, %v551
    %v1805 = vmul.f32 %v1583, %v552
    %v1806 = vmul.f32 %v1582, %v553
    %v1807 = vmul.f32 %v1583, %v554
    %v1808 = vmul.f32 %v1582, %v555
    %v1809 = vmul.f32 %v1583, %v556
    %v1810 = vmul.f32 %v1582, %v557
    %v1811 = vmul.f32 %v1583, %v558
    %v1812 = vmul.f32 %v1582, %v559
    %v1813 = vmul.f32 %v1583, %v560
    %v1814 = vmul.f32 %v1582, %v561
    %v1815 = vmul.f32 %v1583, %v562
    %v1816 = vmul.f32 %v1582, %v563
    %v1817 = vmul.f32 %v1583, %v564
    %v1818 = vmul.f32 %v1582, %v565
    %v1819 = vmul.f32 %v1583, %v566
    %1820 = vmatpush.msra.mxu0 %v1803
    %1821 = vmatpush.msra.mxu0 %v1802
    %1822 = vmatpush.msra.mxu0 %v1801
    %1823 = vmatpush.msra.mxu0 %v1800
    %1824 = vmatpush.msra.mxu0 %v1799
    %1825 = vmatpush.msra.mxu0 %v1798
    %1826 = vmatpush.msra.mxu0 %v1797
    %1827 = vmatpush.msra.mxu0 %v1796
    %1828 = vmatpush.msra.mxu0 %v1795
    %1829 = vmatpush.msra.mxu0 %v1794
    %1830 = vmatpush.msra.mxu0 %v1793
    %1831 = vmatpush.msra.mxu0 %v1792
    %1832 = vmatpush.msra.mxu0 %v1791
    %1833 = vmatpush.msra.mxu0 %v1790
    %1834 = vmatpush.msra.mxu0 %v1789
    %1835 = vmatpush.msra.mxu0 %v1788
    %1836 = vmatmul.f32.gmra.mxu0 %v1784
    %v1837 = vpop.f32.mrf.mxu0
    %v1838 = vadd.f32 0.0, %v1837
    %1839 = vmatmul.f32.gmra.mxu0 %v1786
    %v1840 = vpop.f32.mrf.mxu0
    %v1841 = vadd.f32 0.0, %v1840
    %1842 = vdwg.mxu0
    %1843 = vmatpush.msra.mxu0 %v1819
    %1844 = vmatpush.msra.mxu0 %v1818
    %1845 = vmatpush.msra.mxu0 %v1817
    %1846 = vmatpush.msra.mxu0 %v1816
    %1847 = vmatpush.msra.mxu0 %v1815
    %1848 = vmatpush.msra.mxu0 %v1814
    %1849 = vmatpush.msra.mxu0 %v1813
    %1850 = vmatpush.msra.mxu0 %v1812
    %1851 = vmatpush.msra.mxu0 %v1811
    %1852 = vmatpush.msra.mxu0 %v1810
    %1853 = vmatpush.msra.mxu0 %v1809
    %1854 = vmatpush.msra.mxu0 %v1808
    %1855 = vmatpush.msra.mxu0 %v1807
    %1856 = vmatpush.msra.mxu0 %v1806
    %1857 = vmatpush.msra.mxu0 %v1805
    %1858 = vmatpush.msra.mxu0 %v1804
    %1859 = vmatmul.f32.gmra.mxu0 %v1785
    %v1860 = vpop.f32.mrf.mxu0
    %v1861 = vadd.f32 %v1838, %v1860
    %1862 = vmatmul.f32.gmra.mxu0 %v1787
    %v1863 = vpop.f32.mrf.mxu0
    %v1864 = vadd.f32 %v1841, %v1863
    %1865 = vdwg.mxu0
    %v1866 = vpack.c.bf16 %v1864, %v1861
    %s1867 = scalar_lea.vmem [#allocation7], 192
    %v1868 = vld [vmem:[%s1867] sm:$0xf]
    %v1869 = vld [vmem:[%s1867 + $0x4] sm:$0xf]
    %v1870 = vld [vmem:[%s1867 + $0x8] sm:$0xf]
    %v1871 = vld [vmem:[%s1867 + $0xc] sm:$0xf]
    %v1872 = vld [vmem:[%s1867 + $0x10] sm:$0xf]
    %v1873 = vld [vmem:[%s1867 + $0x14] sm:$0xf]
    %v1874 = vld [vmem:[%s1867 + $0x18] sm:$0xf]
    %v1875 = vld [vmem:[%s1867 + $0x1c] sm:$0xf]
    %v1876 = vld [vmem:[%s1867 + $0x20] sm:$0xf]
    %v1877 = vld [vmem:[%s1867 + $0x24] sm:$0xf]
    %v1878 = vld [vmem:[%s1867 + $0x28] sm:$0xf]
    %v1879 = vld [vmem:[%s1867 + $0x2c] sm:$0xf]
    %v1880 = vld [vmem:[%s1867 + $0x30] sm:$0xf]
    %v1881 = vld [vmem:[%s1867 + $0x34] sm:$0xf]
    %v1882 = vld [vmem:[%s1867 + $0x38] sm:$0xf]
    %v1883 = vld [vmem:[%s1867 + $0x3c] sm:$0xf]
    %s1884 = scalar_lea.vmem [#allocation8], 14
    %v1885 = vld [vmem:[%s1884] sm:$0x1]
    %v1887 = vperm.slane %v1885, 0
    %v1905 = vunpack.c.l.b16 %v1868
    %v1906 = vunpack.c.l.b16 %v1869
    %v1907 = vunpack.c.l.b16 %v1870
    %v1908 = vunpack.c.l.b16 %v1871
    %v1909 = vunpack.c.l.b16 %v1872
    %v1910 = vunpack.c.l.b16 %v1873
    %v1911 = vunpack.c.l.b16 %v1874
    %v1912 = vunpack.c.l.b16 %v1875
    %v1913 = vunpack.c.l.b16 %v1876
    %v1914 = vunpack.c.l.b16 %v1877
    %v1915 = vunpack.c.l.b16 %v1878
    %v1916 = vunpack.c.l.b16 %v1879
    %v1917 = vunpack.c.l.b16 %v1880
    %v1918 = vunpack.c.l.b16 %v1881
    %v1919 = vunpack.c.l.b16 %v1882
    %v1920 = vunpack.c.l.b16 %v1883
    %v1921 = vpack.c.b16 %v1906, %v1905
    %v1922 = vpack.c.b16 %v1908, %v1907
    %v1923 = vpack.c.b16 %v1910, %v1909
    %v1924 = vpack.c.b16 %v1912, %v1911
    %v1925 = vpack.c.b16 %v1914, %v1913
    %v1926 = vpack.c.b16 %v1916, %v1915
    %v1927 = vpack.c.b16 %v1918, %v1917
    %v1928 = vpack.c.b16 %v1920, %v1919
    %1937 = vmatpush.bf16.msra.mxu0 %v1928
    %1938 = vmatpush.bf16.msra.mxu0 %v1927
    %1939 = vmatpush.bf16.msra.mxu0 %v1926
    %1940 = vmatpush.bf16.msra.mxu0 %v1925
    %1941 = vmatpush.bf16.msra.mxu0 %v1924
    %1942 = vmatpush.bf16.msra.mxu0 %v1923
    %1943 = vmatpush.bf16.msra.mxu0 %v1922
    %1944 = vmatpush.bf16.msra.mxu0 %v1921
    %1945 = vmatmul.bf16.gmra.mxu0 %v1866
    %v1946 = vpop.f32.mrf.mxu0
    %v1947 = vadd.f32 %v1887, %v1946
    %v1948 = vpop.f32.mrf.mxu0
    %v1949 = vadd.f32 %v1887, %v1948
    %1950 = vdwg.mxu0
    %v1951 = vadd.f32 %v1357, %v1947
    %v1952 = vadd.f32 %v1358, %v1949
    %s1953 = scalar_lea.vmem [#allocation8], 17
    %v1954 = vld [vmem:[%s1953] sm:$0x1]
    %s1955 = scalar_lea.vmem [#allocation8], 18
    %v1956 = vld [vmem:[%s1955] sm:$0x1]
    %v1957 = vmul.f32 %v1951, %v1951
    %v1958 = vmul.f32 %v1952, %v1952
    %1959 = vmatpush.msra.mxu0 %v1024
    %1960 = vmatpush.msra.mxu0 %v1023
    %1961 = vmatpush.msra.mxu0 %v1022
    %1962 = vmatpush.msra.mxu0 %v1021
    %1963 = vmatpush.msra.mxu0 %v1020
    %1964 = vmatpush.msra.mxu0 %v1019
    %1965 = vmatpush.msra.mxu0 %v1018
    %1966 = vmatpush.msra.mxu0 %v1017
    %1967 = vmatpush.msra.mxu0 %v1016
    %1968 = vmatpush.msra.mxu0 %v1015
    %1969 = vmatpush.msra.mxu0 %v1014
    %1970 = vmatpush.msra.mxu0 %v1013
    %1971 = vmatpush.msra.mxu0 %v1012
    %1972 = vmatpush.msra.mxu0 %v1011
    %1973 = vmatpush.msra.mxu0 %v1010
    %1974 = vmatpush.msra.mxu0 %v1009
    %1975 = vmatmul.f32.gmra.mxu0 %v1951
    %v1976 = vpop.f32.mrf.mxu0
    %v1977 = vadd.f32 0.0, %v1976
    %1978 = vmatmul.f32.gmra.mxu0 %v1952
    %v1979 = vpop.f32.mrf.mxu0
    %v1980 = vadd.f32 0.0, %v1979
    %1981 = vmatmul.f32.gmra.mxu0 %v1957
    %v1982 = vpop.f32.mrf.mxu0
    %v1983 = vadd.f32 0.0, %v1982
    %1984 = vmatmul.f32.gmra.mxu0 %v1958
    %v1985 = vpop.f32.mrf.mxu0
    %v1986 = vadd.f32 0.0, %v1985
    %1987 = vdwg.mxu0
    %v1988 = vmul.f32 %v1977, %v1977
    %v1989 = vmul.f32 %v1980, %v1980
    %v1990 = vsub.f32 %v1983, %v1988
    %v1991 = vsub.f32 %v1986, %v1989
    %v1992 = vsub.f32 %v1951, %v1977
    %v1993 = vsub.f32 %v1952, %v1980
    %v1994 = vadd.f32 %v1990, 1e-05
    %v1995 = vadd.f32 %v1991, 1e-05
    %v1996 = vrsqrt.pop %v1994
    %v1997 = vmul.f32 %v1996, %v1994
    %v1998 = vmul.f32 %v1997, %v1996
    %v1999 = vmul.f32 0.5, %v1998
    %v2000 = vsub.f32 1.5, %v1999
    %v2001 = vmul.f32 %v1996, %v2000
    %vm2002 = vweird.f32 %v1994
    %vm2003 = vweird.f32 %v1996
    %vm2004 = vmor %vm2002, %vm2003
    %v2005 = vsel %vm2004, %v1996, %v2001
    %v2006 = vrsqrt.pop %v1995
    %v2007 = vmul.f32 %v2006, %v1995
    %v2008 = vmul.f32 %v2007, %v2006
    %v2009 = vmul.f32 0.5, %v2008
    %v2010 = vsub.f32 1.5, %v2009
    %v2011 = vmul.f32 %v2006, %v2010
    %vm2012 = vweird.f32 %v1995
    %vm2013 = vweird.f32 %v2006
    %vm2014 = vmor %vm2012, %vm2013
    %v2015 = vsel %vm2014, %v2006, %v2011
    %v2016 = vmul.f32 %v1992, %v2005
    %v2017 = vmul.f32 %v1993, %v2015
    %v2019 = vperm.slane %v1954, 0
    %v2021 = vmul.f32 %v2016, %v2019
    %v2022 = vmul.f32 %v2017, %v2019
    %v2024 = vperm.slane %v1956, 0
    %v2026 = vadd.f32 %v2021, %v2024
    %v2027 = vadd.f32 %v2022, %v2024
    %v2028 = vpack.c.bf16 %v2027, %v2026
    %s2029 = scalar_lea.vmem [#allocation7], 256
    %v2030 = vld [vmem:[%s2029] sm:$0xf]
    %v2031 = vld [vmem:[%s2029 + $0x4] sm:$0xf]
    %v2032 = vld [vmem:[%s2029 + $0x8] sm:$0xf]
    %v2033 = vld [vmem:[%s2029 + $0xc] sm:$0xf]
    %v2034 = vld [vmem:[%s2029 + $0x10] sm:$0xf]
    %v2035 = vld [vmem:[%s2029 + $0x14] sm:$0xf]
    %v2036 = vld [vmem:[%s2029 + $0x18] sm:$0xf]
    %v2037 = vld [vmem:[%s2029 + $0x1c] sm:$0xf]
    %v2038 = vld [vmem:[%s2029 + $0x20] sm:$0xf]
    %v2039 = vld [vmem:[%s2029 + $0x24] sm:$0xf]
    %v2040 = vld [vmem:[%s2029 + $0x28] sm:$0xf]
    %v2041 = vld [vmem:[%s2029 + $0x2c] sm:$0xf]
    %v2042 = vld [vmem:[%s2029 + $0x30] sm:$0xf]
    %v2043 = vld [vmem:[%s2029 + $0x34] sm:$0xf]
    %v2044 = vld [vmem:[%s2029 + $0x38] sm:$0xf]
    %v2045 = vld [vmem:[%s2029 + $0x3c] sm:$0xf]
    %s2046 = scalar_lea.vmem [#allocation8], 15
    %v2047 = vld [vmem:[%s2046] sm:$0x1]
    %v2049 = vperm.slane %v2047, 0
    %v2067 = vunpack.c.l.b16 %v2030
    %v2068 = vunpack.c.l.b16 %v2031
    %v2069 = vunpack.c.l.b16 %v2032
    %v2070 = vunpack.c.l.b16 %v2033
    %v2071 = vunpack.c.l.b16 %v2034
    %v2072 = vunpack.c.l.b16 %v2035
    %v2073 = vunpack.c.l.b16 %v2036
    %v2074 = vunpack.c.l.b16 %v2037
    %v2075 = vunpack.c.l.b16 %v2038
    %v2076 = vunpack.c.l.b16 %v2039
    %v2077 = vunpack.c.l.b16 %v2040
    %v2078 = vunpack.c.l.b16 %v2041
    %v2079 = vunpack.c.l.b16 %v2042
    %v2080 = vunpack.c.l.b16 %v2043
    %v2081 = vunpack.c.l.b16 %v2044
    %v2082 = vunpack.c.l.b16 %v2045
    %v2083 = vpack.c.b16 %v2068, %v2067
    %v2084 = vpack.c.b16 %v2070, %v2069
    %v2085 = vpack.c.b16 %v2072, %v2071
    %v2086 = vpack.c.b16 %v2074, %v2073
    %v2087 = vpack.c.b16 %v2076, %v2075
    %v2088 = vpack.c.b16 %v2078, %v2077
    %v2089 = vpack.c.b16 %v2080, %v2079
    %v2090 = vpack.c.b16 %v2082, %v2081
    %2099 = vmatpush.bf16.msra.mxu0 %v2090
    %2100 = vmatpush.bf16.msra.mxu0 %v2089
    %2101 = vmatpush.bf16.msra.mxu0 %v2088
    %2102 = vmatpush.bf16.msra.mxu0 %v2087
    %2103 = vmatpush.bf16.msra.mxu0 %v2086
    %2104 = vmatpush.bf16.msra.mxu0 %v2085
    %2105 = vmatpush.bf16.msra.mxu0 %v2084
    %2106 = vmatpush.bf16.msra.mxu0 %v2083
    %2107 = vmatmul.bf16.gmra.mxu0 %v2028
    %v2108 = vpop.f32.mrf.mxu0
    %v2109 = vadd.f32 %v2049, %v2108
    %v2110 = vpop.f32.mrf.mxu0
    %v2111 = vadd.f32 %v2049, %v2110
    %2112 = vdwg.mxu0
    %v2113 = vmul.f32 %v2109, %v2109
    %v2114 = vmul.f32 %v2111, %v2111
    %v2115 = vmul.f32 %v2109, %v2113
    %v2116 = vmul.f32 %v2111, %v2114
    %v2117 = vmul.f32 %v2115, 0.044715
    %v2118 = vmul.f32 %v2116, 0.044715
    %v2119 = vadd.f32 %v2109, %v2117
    %v2120 = vadd.f32 %v2111, %v2118
    %v2121 = vmul.f32 %v2119, 0.7978846
    %v2122 = vmul.f32 %v2120, 0.7978846
    %v2123 = vtanh.pop %v2121
    %v2124 = vtanh.pop %v2122
    %v2125 = vadd.f32 %v2123, 1.0
    %v2126 = vadd.f32 %v2124, 1.0
    %v2127 = vmul.f32 %v2125, 0.5
    %v2128 = vmul.f32 %v2126, 0.5
    %v2129 = vmul.f32 %v2109, %v2127
    %v2130 = vmul.f32 %v2111, %v2128
    %v2131 = vpack.c.bf16 %v2130, %v2129
    %s2132 = scalar_lea.vmem [#allocation7], 320
    %v2133 = vld [vmem:[%s2132] sm:$0xf]
    %v2134 = vld [vmem:[%s2132 + $0x4] sm:$0xf]
    %v2135 = vld [vmem:[%s2132 + $0x8] sm:$0xf]
    %v2136 = vld [vmem:[%s2132 + $0xc] sm:$0xf]
    %v2137 = vld [vmem:[%s2132 + $0x10] sm:$0xf]
    %v2138 = vld [vmem:[%s2132 + $0x14] sm:$0xf]
    %v2139 = vld [vmem:[%s2132 + $0x18] sm:$0xf]
    %v2140 = vld [vmem:[%s2132 + $0x1c] sm:$0xf]
    %v2141 = vld [vmem:[%s2132 + $0x20] sm:$0xf]
    %v2142 = vld [vmem:[%s2132 + $0x24] sm:$0xf]
    %v2143 = vld [vmem:[%s2132 + $0x28] sm:$0xf]
    %v2144 = vld [vmem:[%s2132 + $0x2c] sm:$0xf]
    %v2145 = vld [vmem:[%s2132 + $0x30] sm:$0xf]
    %v2146 = vld [vmem:[%s2132 + $0x34] sm:$0xf]
    %v2147 = vld [vmem:[%s2132 + $0x38] sm:$0xf]
    %v2148 = vld [vmem:[%s2132 + $0x3c] sm:$0xf]
    %s2149 = scalar_lea.vmem [#allocation8], 16
    %v2150 = vld [vmem:[%s2149] sm:$0x1]
    %v2152 = vperm.slane %v2150, 0
    %v2170 = vunpack.c.l.b16 %v2133
    %v2171 = vunpack.c.l.b16 %v2134
    %v2172 = vunpack.c.l.b16 %v2135
    %v2173 = vunpack.c.l.b16 %v2136
    %v2174 = vunpack.c.l.b16 %v2137
    %v2175 = vunpack.c.l.b16 %v2138
    %v2176 = vunpack.c.l.b16 %v2139
    %v2177 = vunpack.c.l.b16 %v2140
    %v2178 = vunpack.c.l.b16 %v2141
    %v2179 = vunpack.c.l.b16 %v2142
    %v2180 = vunpack.c.l.b16 %v2143
    %v2181 = vunpack.c.l.b16 %v2144
    %v2182 = vunpack.c.l.b16 %v2145
    %v2183 = vunpack.c.l.b16 %v2146
    %v2184 = vunpack.c.l.b16 %v2147
    %v2185 = vunpack.c.l.b16 %v2148
    %v2186 = vpack.c.b16 %v2171, %v2170
    %v2187 = vpack.c.b16 %v2173, %v2172
    %v2188 = vpack.c.b16 %v2175, %v2174
    %v2189 = vpack.c.b16 %v2177, %v2176
    %v2190 = vpack.c.b16 %v2179, %v2178
    %v2191 = vpack.c.b16 %v2181, %v2180
    %v2192 = vpack.c.b16 %v2183, %v2182
    %v2193 = vpack.c.b16 %v2185, %v2184
    %2202 = vmatpush.bf16.msra.mxu0 %v2193
    %2203 = vmatpush.bf16.msra.mxu0 %v2192
    %2204 = vmatpush.bf16.msra.mxu0 %v2191
    %2205 = vmatpush.bf16.msra.mxu0 %v2190
    %2206 = vmatpush.bf16.msra.mxu0 %v2189
    %2207 = vmatpush.bf16.msra.mxu0 %v2188
    %2208 = vmatpush.bf16.msra.mxu0 %v2187
    %2209 = vmatpush.bf16.msra.mxu0 %v2186
    %2210 = vmatmul.bf16.gmra.mxu0 %v2131
    %v2211 = vpop.f32.mrf.mxu0
    %v2212 = vadd.f32 %v2152, %v2211
    %v2213 = vpop.f32.mrf.mxu0
    %v2214 = vadd.f32 %v2152, %v2213
    %2215 = vdwg.mxu0
    %v2216 = vadd.f32 %v2026, %v2212
    %v2217 = vadd.f32 %v2027, %v2214
    %s2218 = scalar_lea.vmem [#allocation8], 19
    %v2219 = vld [vmem:[%s2218] sm:$0x1]
    %s2220 = scalar_lea.vmem [#allocation8], 20
    %v2221 = vld [vmem:[%s2220] sm:$0x1]
    %v2222 = vmul.f32 %v2216, %v2216
    %v2223 = vmul.f32 %v2217, %v2217
    %2224 = vmatpush.msra.mxu0 %v1024
    %2225 = vmatpush.msra.mxu0 %v1023
    %2226 = vmatpush.msra.mxu0 %v1022
    %2227 = vmatpush.msra.mxu0 %v1021
    %2228 = vmatpush.msra.mxu0 %v1020
    %2229 = vmatpush.msra.mxu0 %v1019
    %2230 = vmatpush.msra.mxu0 %v1018
    %2231 = vmatpush.msra.mxu0 %v1017
    %2232 = vmatpush.msra.mxu0 %v1016
    %2233 = vmatpush.msra.mxu0 %v1015
    %2234 = vmatpush.msra.mxu0 %v1014
    %2235 = vmatpush.msra.mxu0 %v1013
    %2236 = vmatpush.msra.mxu0 %v1012
    %2237 = vmatpush.msra.mxu0 %v1011
    %2238 = vmatpush.msra.mxu0 %v1010
    %2239 = vmatpush.msra.mxu0 %v1009
    %2240 = vmatmul.f32.gmra.mxu0 %v2216
    %v2241 = vpop.f32.mrf.mxu0
    %v2242 = vadd.f32 0.0, %v2241
    %2243 = vmatmul.f32.gmra.mxu0 %v2217
    %v2244 = vpop.f32.mrf.mxu0
    %v2245 = vadd.f32 0.0, %v2244
    %2246 = vmatmul.f32.gmra.mxu0 %v2222
    %v2247 = vpop.f32.mrf.mxu0
    %v2248 = vadd.f32 0.0, %v2247
    %2249 = vmatmul.f32.gmra.mxu0 %v2223
    %v2250 = vpop.f32.mrf.mxu0
    %v2251 = vadd.f32 0.0, %v2250
    %2252 = vdwg.mxu0
    %v2253 = vmul.f32 %v2242, %v2242
    %v2254 = vmul.f32 %v2245, %v2245
    %v2255 = vsub.f32 %v2248, %v2253
    %v2256 = vsub.f32 %v2251, %v2254
    %v2257 = vsub.f32 %v2216, %v2242
    %v2258 = vsub.f32 %v2217, %v2245
    %v2259 = vadd.f32 %v2255, 1e-05
    %v2260 = vadd.f32 %v2256, 1e-05
    %v2261 = vrsqrt.pop %v2259
    %v2262 = vmul.f32 %v2261, %v2259
    %v2263 = vmul.f32 %v2262, %v2261
    %v2264 = vmul.f32 0.5, %v2263
    %v2265 = vsub.f32 1.5, %v2264
    %v2266 = vmul.f32 %v2261, %v2265
    %vm2267 = vweird.f32 %v2259
    %vm2268 = vweird.f32 %v2261
    %vm2269 = vmor %vm2267, %vm2268
    %v2270 = vsel %vm2269, %v2261, %v2266
    %v2271 = vrsqrt.pop %v2260
    %v2272 = vmul.f32 %v2271, %v2260
    %v2273 = vmul.f32 %v2272, %v2271
    %v2274 = vmul.f32 0.5, %v2273
    %v2275 = vsub.f32 1.5, %v2274
    %v2276 = vmul.f32 %v2271, %v2275
    %vm2277 = vweird.f32 %v2260
    %vm2278 = vweird.f32 %v2271
    %vm2279 = vmor %vm2277, %vm2278
    %v2280 = vsel %vm2279, %v2271, %v2276
    %v2281 = vmul.f32 %v2257, %v2270
    %v2282 = vmul.f32 %v2258, %v2280
    %v2284 = vperm.slane %v2219, 0
    %v2286 = vmul.f32 %v2281, %v2284
    %v2287 = vmul.f32 %v2282, %v2284
    %v2289 = vperm.slane %v2221, 0
    %v2291 = vadd.f32 %v2286, %v2289
    %v2292 = vadd.f32 %v2287, %v2289
    %s2293 = scalar_lea.vmem [#allocation8], 21
    %v2294 = vld [vmem:[%s2293] sm:$0x1]
    %s2295 = scalar_lea.vmem [#allocation8], 22
    %v2296 = vld [vmem:[%s2295] sm:$0x1]
    %v2297 = vmul.f32 %v2291, %v2291
    %v2298 = vmul.f32 %v2292, %v2292
    %2299 = vmatpush.msra.mxu0 %v1024
    %2300 = vmatpush.msra.mxu0 %v1023
    %2301 = vmatpush.msra.mxu0 %v1022
    %2302 = vmatpush.msra.mxu0 %v1021
    %2303 = vmatpush.msra.mxu0 %v1020
    %2304 = vmatpush.msra.mxu0 %v1019
    %2305 = vmatpush.msra.mxu0 %v1018
    %2306 = vmatpush.msra.mxu0 %v1017
    %2307 = vmatpush.msra.mxu0 %v1016
    %2308 = vmatpush.msra.mxu0 %v1015
    %2309 = vmatpush.msra.mxu0 %v1014
    %2310 = vmatpush.msra.mxu0 %v1013
    %2311 = vmatpush.msra.mxu0 %v1012
    %2312 = vmatpush.msra.mxu0 %v1011
    %2313 = vmatpush.msra.mxu0 %v1010
    %2314 = vmatpush.msra.mxu0 %v1009
    %2315 = vmatmul.f32.gmra.mxu0 %v2291
    %v2316 = vpop.f32.mrf.mxu0
    %v2317 = vadd.f32 0.0, %v2316
    %2318 = vmatmul.f32.gmra.mxu0 %v2292
    %v2319 = vpop.f32.mrf.mxu0
    %v2320 = vadd.f32 0.0, %v2319
    %2321 = vmatmul.f32.gmra.mxu0 %v2297
    %v2322 = vpop.f32.mrf.mxu0
    %v2323 = vadd.f32 0.0, %v2322
    %2324 = vmatmul.f32.gmra.mxu0 %v2298
    %v2325 = vpop.f32.mrf.mxu0
    %v2326 = vadd.f32 0.0, %v2325
    %2327 = vdwg.mxu0
    %v2328 = vmul.f32 %v2317, %v2317
    %v2329 = vmul.f32 %v2320, %v2320
    %v2330 = vsub.f32 %v2323, %v2328
    %v2331 = vsub.f32 %v2326, %v2329
    %v2332 = vsub.f32 %v2291, %v2317
    %v2333 = vsub.f32 %v2292, %v2320
    %v2334 = vadd.f32 %v2330, 1e-05
    %v2335 = vadd.f32 %v2331, 1e-05
    %v2336 = vrsqrt.pop %v2334
    %v2337 = vmul.f32 %v2336, %v2334
    %v2338 = vmul.f32 %v2337, %v2336
    %v2339 = vmul.f32 0.5, %v2338
    %v2340 = vsub.f32 1.5, %v2339
    %v2341 = vmul.f32 %v2336, %v2340
    %vm2342 = vweird.f32 %v2334
    %vm2343 = vweird.f32 %v2336
    %vm2344 = vmor %vm2342, %vm2343
    %v2345 = vsel %vm2344, %v2336, %v2341
    %v2346 = vrsqrt.pop %v2335
    %v2347 = vmul.f32 %v2346, %v2335
    %v2348 = vmul.f32 %v2347, %v2346
    %v2349 = vmul.f32 0.5, %v2348
    %v2350 = vsub.f32 1.5, %v2349
    %v2351 = vmul.f32 %v2346, %v2350
    %vm2352 = vweird.f32 %v2335
    %vm2353 = vweird.f32 %v2346
    %vm2354 = vmor %vm2352, %vm2353
    %v2355 = vsel %vm2354, %v2346, %v2351
    %v2356 = vmul.f32 %v2332, %v2345
    %v2357 = vmul.f32 %v2333, %v2355
    %v2359 = vperm.slane %v2294, 0
    %v2361 = vmul.f32 %v2356, %v2359
    %v2362 = vmul.f32 %v2357, %v2359
    %v2364 = vperm.slane %v2296, 0
    %v2366 = vadd.f32 %v2361, %v2364
    %v2367 = vadd.f32 %v2362, %v2364
    %v2368 = vpack.c.bf16 %v2367, %v2366
    %v2369 = vld [vmem:[#allocation10] sm:$0xf]
    %v2370 = vld [vmem:[#allocation10 + $0x4] sm:$0xf]
    %v2371 = vld [vmem:[#allocation10 + $0x8] sm:$0xf]
    %v2372 = vld [vmem:[#allocation10 + $0xc] sm:$0xf]
    %v2373 = vld [vmem:[#allocation10 + $0x10] sm:$0xf]
    %v2374 = vld [vmem:[#allocation10 + $0x14] sm:$0xf]
    %v2375 = vld [vmem:[#allocation10 + $0x18] sm:$0xf]
    %v2376 = vld [vmem:[#allocation10 + $0x1c] sm:$0xf]
    %v2377 = vld [vmem:[#allocation10 + $0x20] sm:$0xf]
    %v2378 = vld [vmem:[#allocation10 + $0x24] sm:$0xf]
    %v2379 = vld [vmem:[#allocation10 + $0x28] sm:$0xf]
    %v2380 = vld [vmem:[#allocation10 + $0x2c] sm:$0xf]
    %v2381 = vld [vmem:[#allocation10 + $0x30] sm:$0xf]
    %v2382 = vld [vmem:[#allocation10 + $0x34] sm:$0xf]
    %v2383 = vld [vmem:[#allocation10 + $0x38] sm:$0xf]
    %v2384 = vld [vmem:[#allocation10 + $0x3c] sm:$0xf]
    %v2385 = vld [vmem:[%s6] sm:$0x1]
    %v2387 = vperm.slane %v2385, 0
    %v2405 = vunpack.c.l.b16 %v2369
    %v2406 = vunpack.c.l.b16 %v2370
    %v2407 = vunpack.c.l.b16 %v2371
    %v2408 = vunpack.c.l.b16 %v2372
    %v2409 = vunpack.c.l.b16 %v2373
    %v2410 = vunpack.c.l.b16 %v2374
    %v2411 = vunpack.c.l.b16 %v2375
    %v2412 = vunpack.c.l.b16 %v2376
    %v2413 = vunpack.c.l.b16 %v2377
    %v2414 = vunpack.c.l.b16 %v2378
    %v2415 = vunpack.c.l.b16 %v2379
    %v2416 = vunpack.c.l.b16 %v2380
    %v2417 = vunpack.c.l.b16 %v2381
    %v2418 = vunpack.c.l.b16 %v2382
    %v2419 = vunpack.c.l.b16 %v2383
    %v2420 = vunpack.c.l.b16 %v2384
    %v2421 = vpack.c.b16 %v2406, %v2405
    %v2422 = vpack.c.b16 %v2408, %v2407
    %v2423 = vpack.c.b16 %v2410, %v2409
    %v2424 = vpack.c.b16 %v2412, %v2411
    %v2425 = vpack.c.b16 %v2414, %v2413
    %v2426 = vpack.c.b16 %v2416, %v2415
    %v2427 = vpack.c.b16 %v2418, %v2417
    %v2428 = vpack.c.b16 %v2420, %v2419
    %2437 = vmatpush.bf16.msra.mxu0 %v2428
    %2438 = vmatpush.bf16.msra.mxu0 %v2427
    %2439 = vmatpush.bf16.msra.mxu0 %v2426
    %2440 = vmatpush.bf16.msra.mxu0 %v2425
    %2441 = vmatpush.bf16.msra.mxu0 %v2424
    %2442 = vmatpush.bf16.msra.mxu0 %v2423
    %2443 = vmatpush.bf16.msra.mxu0 %v2422
    %2444 = vmatpush.bf16.msra.mxu0 %v2421
    %2445 = vmatmul.bf16.gmra.mxu0 %v2368
    %v2446 = vpop.f32.mrf.mxu0
    %v2447 = vadd.f32 %v2387, %v2446
    %v2448 = vpop.f32.mrf.mxu0
    %v2449 = vadd.f32 %v2387, %v2448
    %2450 = vdwg.mxu0
    %v2451 = vmul.f32 %v2447, %v238
    %v2452 = vmul.f32 %v2449, %v250
    %s2453 = sld [smem:[#allocation17]]
    %v2454 = vstv %s2453
    %v2455 = vmul.f32 %v211, %v2454
    %v2456 = vmul.f32 %v212, %v2454
    %v2457 = vadd.f32 %v2451, %v2455
    %v2458 = vadd.f32 %v2452, %v2456
    %s2459 = sld [smem:[#allocation17 + $0x1]]
    %v2460 = vstv %s2459
    %v2461 = vadd.f32 %v2457, %v2460
    %v2462 = vadd.f32 %v2458, %v2460
    %2463 = vst [vmem:[%s12] sm:$0xff] %v2461
    %2464 = vst [vmem:[%s12 + $0x8] sm:$0xff] %v2462
    // Predicated region
    $region90: #{ensemble_forward.1} parent=1 // pred_check
      _
    $region91: #{ensemble_forward.1} parent=1 // pred_check_branch
      %2466 = sbr.rel (0) target = $region93
    $region92: #{ensemble_forward.1} parent=1 // pred_region
      _
    $region93: #{ensemble_forward.1} parent=1 // pred_fallthru
      _
    // Predicated region
    $region94: #{ensemble_forward.1} parent=1 // pred_check
      _
    $region95: #{ensemble_forward.1} parent=1 // pred_check_branch
      %2468 = sbr.rel (0) target = $region97
    $region96: #{ensemble_forward.1} parent=1 // pred_region
      _
    $region97: #{ensemble_forward.1} parent=1 // pred_fallthru
      _
    %2469 = vsyncpa [#allocation3], 1
    %2470 = vsyncpa [#allocation6], 1
    %2471 = vsyncpa [#allocation9], 1
    %2472 = vsyncpa [#allocation12], 1
    %2473 = vsyncpa [#allocation15], 1
    %2474 = vsyncpa [#allocation4], 1

</llo_original>
